<compile_context>
chip_gen: v7x
topology: tpu7x:2x2x1
jax: 0.10.0
libtpu: 0.0.40
codegen_flags: <defaults>
</compile_context>

<pallas_src>
import math

import jax
import jax.numpy as jnp
import numpy as np
from jax.experimental import pallas as pl
from jax.experimental.pallas import tpu as pltpu

EMB = 64
LN_EPS = 1e-5


# ----------------------------------------------------------------------------
# Fused Pallas kernel: embeds -> conv_v_to_c -> conv_c_to_v -> head
# ----------------------------------------------------------------------------
def gnn_fused_kernel(cons_ref, var_ref, eidx_ref, ef_ref,
                     cw1_ref, cw2_ref, vw1_ref, vw2_ref,
                     a_wl, a_bl, a_we, a_be, a_g, a_b, a_wf, a_wo1, a_wo2,
                     b_wl, b_bl, b_we, b_be, b_g, b_b, b_wf, b_wo1, b_wo2,
                     ow1_ref, ow2_ref, o_ref):
    NC = cons_ref.shape[0]
    NV = var_ref.shape[0]
    E = ef_ref.shape[0]
    inv_emb = 1.0 / EMB

    # --- embeddings: Linear(1->64,no bias)+ReLU -> Linear(64->64,no bias)+ReLU
    c = jnp.maximum(cons_ref[...] * cw1_ref[...], 0.0)
    c = jnp.maximum(jnp.dot(c, cw2_ref[...], preferred_element_type=jnp.float32), 0.0)
    v = jnp.maximum(var_ref[...] * vw1_ref[...], 0.0)
    v = jnp.maximum(jnp.dot(v, vw2_ref[...], preferred_element_type=jnp.float32), 0.0)

    # --- incidence one-hots, built once and shared by both convolutions
    #     oh_c[n,e] = (constraint index of edge e == n)   [NC, E]
    #     oh_v[n,e] = (variable   index of edge e == n)   [NV, E]
    src_c = eidx_ref[0:1, :]                                              # [1, E]
    src_v = eidx_ref[1:2, :]                                              # [1, E]
    oh_c = (jax.lax.broadcasted_iota(jnp.int32, (NC, E), 0) == src_c).astype(jnp.float32)
    oh_v = (jax.lax.broadcasted_iota(jnp.int32, (NV, E), 0) == src_v).astype(jnp.float32)

    ef = ef_ref[...]                                                      # [E, 1]

    def conv(left, right, oh_gather, oh_scatter, wl, bl, we, be, g, b, wf, wo1, wo2):
        # gather x_j = left[src]: contract the node axis of the one-hot (MXU)
        x_j = jax.lax.dot_general(oh_gather, left, (((0,), (0,)), ((), ())),
                                  preferred_element_type=jnp.float32)     # [E, 64]
        # message MLP
        h = jnp.dot(x_j, wl[...], preferred_element_type=jnp.float32) + bl[...]
        h = h + ef * we[...] + be[...]                                    # Linear(1->64) edge feats
        # one-pass LayerNorm statistics (single cross-lane sweep)
        s1 = jnp.sum(h, axis=-1, keepdims=True)
        s2 = jnp.sum(h * h, axis=-1, keepdims=True)
        mu = s1 * inv_emb
        var_ = jnp.maximum(s2 * inv_emb - mu * mu, 0.0)
        h = (h - mu) * jax.lax.rsqrt(var_ + LN_EPS)
        h = jnp.maximum(h * g[...] + b[...], 0.0)                         # LN affine + ReLU
        msg = jnp.dot(h, wf[...], preferred_element_type=jnp.float32)     # [E, 64]
        # scatter-add to targets: one-hot @ messages (MXU, exact f32 accum)
        agg = jnp.dot(oh_scatter, msg, preferred_element_type=jnp.float32)  # [NR, 64]
        # output_module: real concat -> single lane-dense K=128 contraction
        z = jnp.concatenate([agg, right], axis=-1)                        # [NR, 128]
        z = jnp.maximum(jnp.dot(z, wo1[...], preferred_element_type=jnp.float32), 0.0)
        return jnp.dot(z, wo2[...], preferred_element_type=jnp.float32)   # [NR, 64]

    # conv_v_to_c: sources = variables, targets = constraints
    c = conv(v, c, oh_v, oh_c, a_wl, a_bl, a_we, a_be, a_g, a_b, a_wf, a_wo1, a_wo2)
    # conv_c_to_v: sources = constraints, targets = variables
    v = conv(c, v, oh_c, oh_v, b_wl, b_bl, b_we, b_be, b_g, b_b, b_wf, b_wo1, b_wo2)

    # --- head: Linear(64->64)+ReLU, row-reduce FIRST, then [1,64]x[64,1] dot
    h = jnp.maximum(jnp.dot(v, ow1_ref[...], preferred_element_type=jnp.float32), 0.0)
    pooled = jnp.sum(h, axis=0, keepdims=True) * (1.0 / NV)               # [1, 64]
    logit = jnp.dot(pooled, ow2_ref[...], preferred_element_type=jnp.float32)  # [1, 1]
    o_ref[...] = jax.nn.sigmoid(logit)


# ----------------------------------------------------------------------------
# Wrapper
# ----------------------------------------------------------------------------
def _conv_args(p):
    return (p["wl"], p["bl"], p["we"], p["be"], p["g"], p["b"], p["wf"],
            p["wo1"], p["wo2"])


def gnn_policy_forward(params, constraint_features, edge_indices, edge_features,
                       variable_features):
    """Full GNNPolicy forward pass (matches the PyTorch module semantics)."""
    nc = constraint_features.shape[0]
    nv = variable_features.shape[0]
    ne = edge_features.shape[0]
    eidx = edge_indices.astype(jnp.int32)             # [2, E], lane-dense

    inputs = (constraint_features, variable_features, eidx, edge_features,
              params["cons_w1"], params["cons_w2"], params["var_w1"], params["var_w2"],
              *_conv_args(params["v2c"]), *_conv_args(params["c2v"]),
              params["out_w1"], params["out_w2"])

    # advisory cost estimate for XLA scheduling around the custom call
    conv_flops = 0
    for nl, nr in ((nv, nc), (nc, nv)):
        conv_flops += 2 * ne * nl * EMB               # gather one-hot matmul
        conv_flops += 4 * ne * EMB * EMB              # wl + wf message matmuls
        conv_flops += 2 * ne * nr * EMB               # scatter one-hot matmul
        conv_flops += 2 * nr * (2 * EMB) * EMB        # output wo1 (K=128)
        conv_flops += 2 * nr * EMB * EMB              # output wo2
    flops = (2 * (nc + nv) * EMB * EMB + (nc + nv) * EMB   # embeddings
             + conv_flops
             + 2 * nv * EMB * EMB + 2 * EMB)               # head
    bytes_accessed = sum(int(a.size) * a.dtype.itemsize for a in inputs) + 4
    transcendentals = 2 * ne + 1                      # rsqrt per edge row/conv + sigmoid

    out = pl.pallas_call(
        gnn_fused_kernel,
        out_shape=jax.ShapeDtypeStruct((1, 1), jnp.float32),
        in_specs=[pl.BlockSpec(memory_space=pltpu.MemorySpace.VMEM)] * len(inputs),
        out_specs=pl.BlockSpec(memory_space=pltpu.MemorySpace.VMEM),
        compiler_params=pltpu.CompilerParams(vmem_limit_bytes=16 * 1024 * 1024),
        cost_estimate=pl.CostEstimate(flops=flops,
                                      transcendentals=transcendentals,
                                      bytes_accessed=bytes_accessed),
    )(*inputs)
    return out.reshape(1)                              # matches torch output shape [1]


# ----------------------------------------------------------------------------
# Deterministic parameter initialization (xavier_normal_, gain=0.2)
# ----------------------------------------------------------------------------
def xavier(key, fan_in, fan_out, gain=0.2):
    std = gain * math.sqrt(2.0 / (fan_in + fan_out))
    return std * jax.random.normal(key, (fan_in, fan_out), jnp.float32)


def bias_init(key, fan_in, fan_out):
    bound = 1.0 / math.sqrt(fan_in)
    return jax.random.uniform(key, (1, fan_out), jnp.float32, -bound, bound)


def make_conv_params(key):
    ks = jax.random.split(key, 8)
    return {
        "wl": xavier(ks[0], EMB, EMB),          # feature_module_left weight
        "bl": bias_init(ks[1], EMB, EMB),       # feature_module_left bias
        "we": xavier(ks[2], 1, EMB),            # feature_module_edge weight
        "be": bias_init(ks[3], 1, EMB),         # feature_module_edge bias
        "g": jnp.ones((1, EMB), jnp.float32),   # LayerNorm weight
        "b": jnp.zeros((1, EMB), jnp.float32),  # LayerNorm bias
        "wf": xavier(ks[4], EMB, EMB),          # feature_module_final Linear (no bias)
        "wo1": xavier(ks[6], 2 * EMB, EMB),     # output_module Linear(128->64, no bias)
        "wo2": xavier(ks[7], EMB, EMB),         # output_module Linear(64->64, no bias)
    }


def make_params(key):
    ks = jax.random.split(key, 8)
    return {
        "cons_w1": xavier(ks[0], 1, EMB),
        "cons_w2": xavier(ks[1], EMB, EMB),
        "var_w1": xavier(ks[2], 1, EMB),
        "var_w2": xavier(ks[3], EMB, EMB),
        "v2c": make_conv_params(ks[4]),
        "c2v": make_conv_params(ks[5]),
        "out_w1": xavier(ks[6], EMB, EMB),
        "out_w2": xavier(ks[7], EMB, 1),
    }


# ----------------------------------------------------------------------------
# Pure-JAX reference (same math, no Pallas) for validation
# ----------------------------------------------------------------------------
def ref_forward(params, cons, ei, ef, var):
    def emb(x, w1, w2):
        h = jnp.maximum(x @ w1, 0.0)
        return jnp.maximum(h @ w2, 0.0)

    def conv(left, right, src, tgt, ef, p):
        x_j = left[src]
        h = x_j @ p["wl"] + p["bl"] + ef @ p["we"] + p["be"]
        mu = h.mean(-1, keepdims=True)
        var_ = ((h - mu) ** 2).mean(-1, keepdims=True)
        h = (h - mu) / jnp.sqrt(var_ + LN_EPS) * p["g"] + p["b"]
        msg = jnp.maximum(h, 0.0) @ p["wf"]
        agg = jax.ops.segment_sum(msg, tgt, num_segments=right.shape[0])
        z = jnp.maximum(jnp.concatenate([agg, right], axis=-1) @ p["wo1"], 0.0)
        return z @ p["wo2"]

    c = emb(cons, params["cons_w1"], params["cons_w2"])
    v = emb(var, params["var_w1"], params["var_w2"])
    c = conv(v, c, ei[1], ei[0], ef, params["v2c"])
    v = conv(c, v, ei[0], ei[1], ef, params["c2v"])
    h = jnp.maximum(v @ params["out_w1"], 0.0)
    o = h @ params["out_w2"]
    return jax.nn.sigmoid(jnp.mean(o, axis=0))


# ----------------------------------------------------------------------------
if __name__ == "__main__":
    key = jax.random.PRNGKey(0)
    k_par, k_c, k_v, k_e, k_ei0, k_ei1 = jax.random.split(key, 6)

    n_cons, n_vars, n_edges = 8, 16, 24

    params = make_params(k_par)

    constraint_features = jax.random.normal(k_c, (n_cons, 1), jnp.float32)
    variable_features = jax.random.normal(k_v, (n_vars, 1), jnp.float32)
    edge_features = jax.random.normal(k_e, (n_edges, 1), jnp.float32)
    edge_indices = jnp.stack([
        jax.random.randint(k_ei0, (n_edges,), 0, n_cons, jnp.int32),
        jax.random.randint(k_ei1, (n_edges,), 0, n_vars, jnp.int32),
    ], axis=0)                                                   # [2, E]

    out = gnn_policy_forward(params, constraint_features, edge_indices,
                             edge_features, variable_features)
    out = jax.block_until_ready(out)

    ref = jax.block_until_ready(
        ref_forward(params, constraint_features, edge_indices, edge_features,
                    variable_features))

    np.testing.assert_allclose(np.asarray(out), np.asarray(ref), rtol=1e-4, atol=1e-5)
    print("KERNEL_OK")
</pallas_src>

<mosaic_0001>
module attributes {stable_mosaic.version = 11 : i64} {
  func.func @gnn_fused_kernel(%arg0: memref<8x1xf32, #tpu.memory_space<vmem>>, %arg1: memref<16x1xf32, #tpu.memory_space<vmem>>, %arg2: memref<2x24xi32, #tpu.memory_space<vmem>>, %arg3: memref<24x1xf32, #tpu.memory_space<vmem>>, %arg4: memref<1x64xf32, #tpu.memory_space<vmem>>, %arg5: memref<64x64xf32, #tpu.memory_space<vmem>>, %arg6: memref<1x64xf32, #tpu.memory_space<vmem>>, %arg7: memref<64x64xf32, #tpu.memory_space<vmem>>, %arg8: memref<64x64xf32, #tpu.memory_space<vmem>>, %arg9: memref<1x64xf32, #tpu.memory_space<vmem>>, %arg10: memref<1x64xf32, #tpu.memory_space<vmem>>, %arg11: memref<1x64xf32, #tpu.memory_space<vmem>>, %arg12: memref<1x64xf32, #tpu.memory_space<vmem>>, %arg13: memref<1x64xf32, #tpu.memory_space<vmem>>, %arg14: memref<64x64xf32, #tpu.memory_space<vmem>>, %arg15: memref<128x64xf32, #tpu.memory_space<vmem>>, %arg16: memref<64x64xf32, #tpu.memory_space<vmem>>, %arg17: memref<64x64xf32, #tpu.memory_space<vmem>>, %arg18: memref<1x64xf32, #tpu.memory_space<vmem>>, %arg19: memref<1x64xf32, #tpu.memory_space<vmem>>, %arg20: memref<1x64xf32, #tpu.memory_space<vmem>>, %arg21: memref<1x64xf32, #tpu.memory_space<vmem>>, %arg22: memref<1x64xf32, #tpu.memory_space<vmem>>, %arg23: memref<64x64xf32, #tpu.memory_space<vmem>>, %arg24: memref<128x64xf32, #tpu.memory_space<vmem>>, %arg25: memref<64x64xf32, #tpu.memory_space<vmem>>, %arg26: memref<64x64xf32, #tpu.memory_space<vmem>>, %arg27: memref<64x1xf32, #tpu.memory_space<vmem>>, %arg28: memref<1x1xf32, #tpu.memory_space<vmem>>) attributes {dimension_semantics = [], scalar_prefetch = 0 : i64, scratch_operands = 0 : i64, tpu.core_type = #tpu.core_type<tc>} {
    %c0 = arith.constant 0 : index
    %c0_0 = arith.constant 0 : index
    %0 = vector.load %arg0[%c0, %c0_0] : memref<8x1xf32, #tpu.memory_space<vmem>>, vector<8x1xf32>
    %c0_1 = arith.constant 0 : index
    %c0_2 = arith.constant 0 : index
    %1 = vector.load %arg4[%c0_1, %c0_2] : memref<1x64xf32, #tpu.memory_space<vmem>>, vector<1x64xf32>
    %2 = vector.broadcast %0 : vector<8x1xf32> to vector<8x64xf32>
    %3 = vector.broadcast %1 : vector<1x64xf32> to vector<8x64xf32>
    %4 = arith.mulf %2, %3 : vector<8x64xf32>
    %cst = arith.constant 0.000000e+00 : f32
    %5 = vector.broadcast %cst : f32 to vector<8x64xf32>
    %6 = arith.maximumf %4, %5 : vector<8x64xf32>
    %c0_3 = arith.constant 0 : index
    %c0_4 = arith.constant 0 : index
    %7 = vector.load %arg5[%c0_3, %c0_4] : memref<64x64xf32, #tpu.memory_space<vmem>>, vector<64x64xf32>
    %cst_5 = arith.constant dense<0.000000e+00> : vector<8x64xf32>
    %8 = tpu.matmul %6, %7, %cst_5 {dimension_numbers = #tpu.dot_dimension_numbers<[1], [0], [0], [1], [0, 0, 1, 1], [], []>} : vector<8x64xf32>, vector<64x64xf32>, vector<8x64xf32> -> vector<8x64xf32>
    %cst_6 = arith.constant 0.000000e+00 : f32
    %9 = vector.broadcast %cst_6 : f32 to vector<8x64xf32>
    %10 = arith.maximumf %8, %9 : vector<8x64xf32>
    %c0_7 = arith.constant 0 : index
    %c0_8 = arith.constant 0 : index
    %11 = vector.load %arg1[%c0_7, %c0_8] : memref<16x1xf32, #tpu.memory_space<vmem>>, vector<16x1xf32>
    %c0_9 = arith.constant 0 : index
    %c0_10 = arith.constant 0 : index
    %12 = vector.load %arg6[%c0_9, %c0_10] : memref<1x64xf32, #tpu.memory_space<vmem>>, vector<1x64xf32>
    %13 = vector.broadcast %11 : vector<16x1xf32> to vector<16x64xf32>
    %14 = vector.broadcast %12 : vector<1x64xf32> to vector<16x64xf32>
    %15 = arith.mulf %13, %14 : vector<16x64xf32>
    %cst_11 = arith.constant 0.000000e+00 : f32
    %16 = vector.broadcast %cst_11 : f32 to vector<16x64xf32>
    %17 = arith.maximumf %15, %16 : vector<16x64xf32>
    %c0_12 = arith.constant 0 : index
    %c0_13 = arith.constant 0 : index
    %18 = vector.load %arg7[%c0_12, %c0_13] : memref<64x64xf32, #tpu.memory_space<vmem>>, vector<64x64xf32>
    %cst_14 = arith.constant dense<0.000000e+00> : vector<16x64xf32>
    %19 = tpu.matmul %17, %18, %cst_14 {dimension_numbers = #tpu.dot_dimension_numbers<[1], [0], [0], [1], [0, 0, 1, 1], [], []>} : vector<16x64xf32>, vector<64x64xf32>, vector<16x64xf32> -> vector<16x64xf32>
    %cst_15 = arith.constant 0.000000e+00 : f32
    %20 = vector.broadcast %cst_15 : f32 to vector<16x64xf32>
    %21 = arith.maximumf %19, %20 : vector<16x64xf32>
    %c0_16 = arith.constant 0 : index
    %c0_17 = arith.constant 0 : index
    %22 = vector.load %arg2[%c0_16, %c0_17] : memref<2x24xi32, #tpu.memory_space<vmem>>, vector<1x24xi32>
    %c1 = arith.constant 1 : index
    %c0_18 = arith.constant 0 : index
    %23 = vector.load %arg2[%c1, %c0_18] : memref<2x24xi32, #tpu.memory_space<vmem>>, vector<1x24xi32>
    %24 = tpu.iota {dimensions = array<i32: 0>} : vector<8x24xi32>
    %25 = vector.broadcast %22 : vector<1x24xi32> to vector<8x24xi32>
    %26 = arith.cmpi eq, %24, %25 : vector<8x24xi32>
    %27 = arith.extui %26 : vector<8x24xi1> to vector<8x24xi32>
    %28 = arith.sitofp %27 : vector<8x24xi32> to vector<8x24xf32>
    %29 = tpu.iota {dimensions = array<i32: 0>} : vector<16x24xi32>
    %30 = vector.broadcast %23 : vector<1x24xi32> to vector<16x24xi32>
    %31 = arith.cmpi eq, %29, %30 : vector<16x24xi32>
    %32 = arith.extui %31 : vector<16x24xi1> to vector<16x24xi32>
    %33 = arith.sitofp %32 : vector<16x24xi32> to vector<16x24xf32>
    %c0_19 = arith.constant 0 : index
    %c0_20 = arith.constant 0 : index
    %34 = vector.load %arg3[%c0_19, %c0_20] : memref<24x1xf32, #tpu.memory_space<vmem>>, vector<24x1xf32>
    %cst_21 = arith.constant dense<0.000000e+00> : vector<24x64xf32>
    %35 = tpu.matmul %33, %21, %cst_21 {dimension_numbers = #tpu.dot_dimension_numbers<[0], [0], [1], [1], [0, 1, 1, 1], [], []>} : vector<16x24xf32>, vector<16x64xf32>, vector<24x64xf32> -> vector<24x64xf32>
    %c0_22 = arith.constant 0 : index
    %c0_23 = arith.constant 0 : index
    %36 = vector.load %arg8[%c0_22, %c0_23] : memref<64x64xf32, #tpu.memory_space<vmem>>, vector<64x64xf32>
    %cst_24 = arith.constant dense<0.000000e+00> : vector<24x64xf32>
    %37 = tpu.matmul %35, %36, %cst_24 {dimension_numbers = #tpu.dot_dimension_numbers<[1], [0], [0], [1], [0, 0, 1, 1], [], []>} : vector<24x64xf32>, vector<64x64xf32>, vector<24x64xf32> -> vector<24x64xf32>
    %c0_25 = arith.constant 0 : index
    %c0_26 = arith.constant 0 : index
    %38 = vector.load %arg9[%c0_25, %c0_26] : memref<1x64xf32, #tpu.memory_space<vmem>>, vector<1x64xf32>
    %39 = vector.broadcast %38 : vector<1x64xf32> to vector<24x64xf32>
    %40 = arith.addf %37, %39 : vector<24x64xf32>
    %c0_27 = arith.constant 0 : index
    %c0_28 = arith.constant 0 : index
    %41 = vector.load %arg10[%c0_27, %c0_28] : memref<1x64xf32, #tpu.memory_space<vmem>>, vector<1x64xf32>
    %42 = vector.broadcast %34 : vector<24x1xf32> to vector<24x64xf32>
    %43 = vector.broadcast %41 : vector<1x64xf32> to vector<24x64xf32>
    %44 = arith.mulf %42, %43 : vector<24x64xf32>
    %45 = arith.addf %40, %44 : vector<24x64xf32>
    %c0_29 = arith.constant 0 : index
    %c0_30 = arith.constant 0 : index
    %46 = vector.load %arg11[%c0_29, %c0_30] : memref<1x64xf32, #tpu.memory_space<vmem>>, vector<1x64xf32>
    %47 = vector.broadcast %46 : vector<1x64xf32> to vector<24x64xf32>
    %48 = arith.addf %45, %47 : vector<24x64xf32>
    %cst_31 = arith.constant dense<0.000000e+00> : vector<24xf32>
    %49 = vector.multi_reduction <add>, %48, %cst_31 [1] : vector<24x64xf32> to vector<24xf32>
    %50 = vector.shape_cast %49 : vector<24xf32> to vector<24x1xf32>
    %51 = arith.mulf %48, %48 : vector<24x64xf32>
    %cst_32 = arith.constant dense<0.000000e+00> : vector<24xf32>
    %52 = vector.multi_reduction <add>, %51, %cst_32 [1] : vector<24x64xf32> to vector<24xf32>
    %53 = vector.shape_cast %52 : vector<24xf32> to vector<24x1xf32>
    %cst_33 = arith.constant 1.562500e-02 : f32
    %54 = vector.broadcast %cst_33 : f32 to vector<24x1xf32>
    %55 = arith.mulf %50, %54 : vector<24x1xf32>
    %cst_34 = arith.constant 1.562500e-02 : f32
    %56 = vector.broadcast %cst_34 : f32 to vector<24x1xf32>
    %57 = arith.mulf %53, %56 : vector<24x1xf32>
    %58 = arith.mulf %55, %55 : vector<24x1xf32>
    %59 = arith.subf %57, %58 : vector<24x1xf32>
    %cst_35 = arith.constant 0.000000e+00 : f32
    %60 = vector.broadcast %cst_35 : f32 to vector<24x1xf32>
    %61 = arith.maximumf %59, %60 : vector<24x1xf32>
    %62 = vector.broadcast %55 : vector<24x1xf32> to vector<24x64xf32>
    %63 = arith.subf %48, %62 : vector<24x64xf32>
    %cst_36 = arith.constant 9.99999974E-6 : f32
    %64 = vector.broadcast %cst_36 : f32 to vector<24x1xf32>
    %65 = arith.addf %61, %64 : vector<24x1xf32>
    %66 = math.rsqrt %65 : vector<24x1xf32>
    %67 = vector.broadcast %66 : vector<24x1xf32> to vector<24x64xf32>
    %68 = arith.mulf %63, %67 : vector<24x64xf32>
    %c0_37 = arith.constant 0 : index
    %c0_38 = arith.constant 0 : index
    %69 = vector.load %arg12[%c0_37, %c0_38] : memref<1x64xf32, #tpu.memory_space<vmem>>, vector<1x64xf32>
    %70 = vector.broadcast %69 : vector<1x64xf32> to vector<24x64xf32>
    %71 = arith.mulf %68, %70 : vector<24x64xf32>
    %c0_39 = arith.constant 0 : index
    %c0_40 = arith.constant 0 : index
    %72 = vector.load %arg13[%c0_39, %c0_40] : memref<1x64xf32, #tpu.memory_space<vmem>>, vector<1x64xf32>
    %73 = vector.broadcast %72 : vector<1x64xf32> to vector<24x64xf32>
    %74 = arith.addf %71, %73 : vector<24x64xf32>
    %cst_41 = arith.constant 0.000000e+00 : f32
    %75 = vector.broadcast %cst_41 : f32 to vector<24x64xf32>
    %76 = arith.maximumf %74, %75 : vector<24x64xf32>
    %c0_42 = arith.constant 0 : index
    %c0_43 = arith.constant 0 : index
    %77 = vector.load %arg14[%c0_42, %c0_43] : memref<64x64xf32, #tpu.memory_space<vmem>>, vector<64x64xf32>
    %cst_44 = arith.constant dense<0.000000e+00> : vector<24x64xf32>
    %78 = tpu.matmul %76, %77, %cst_44 {dimension_numbers = #tpu.dot_dimension_numbers<[1], [0], [0], [1], [0, 0, 1, 1], [], []>} : vector<24x64xf32>, vector<64x64xf32>, vector<24x64xf32> -> vector<24x64xf32>
    %cst_45 = arith.constant dense<0.000000e+00> : vector<8x64xf32>
    %79 = tpu.matmul %28, %78, %cst_45 {dimension_numbers = #tpu.dot_dimension_numbers<[1], [0], [0], [1], [0, 0, 1, 1], [], []>} : vector<8x24xf32>, vector<24x64xf32>, vector<8x64xf32> -> vector<8x64xf32>
    %80 = tpu.concatenate %79, %10 in 1 : vector<8x64xf32>, vector<8x64xf32> -> vector<8x128xf32>
    %c0_46 = arith.constant 0 : index
    %c0_47 = arith.constant 0 : index
    %81 = vector.load %arg15[%c0_46, %c0_47] : memref<128x64xf32, #tpu.memory_space<vmem>>, vector<128x64xf32>
    %cst_48 = arith.constant dense<0.000000e+00> : vector<8x64xf32>
    %82 = tpu.matmul %80, %81, %cst_48 {dimension_numbers = #tpu.dot_dimension_numbers<[1], [0], [0], [1], [0, 0, 1, 1], [], []>} : vector<8x128xf32>, vector<128x64xf32>, vector<8x64xf32> -> vector<8x64xf32>
    %cst_49 = arith.constant 0.000000e+00 : f32
    %83 = vector.broadcast %cst_49 : f32 to vector<8x64xf32>
    %84 = arith.maximumf %82, %83 : vector<8x64xf32>
    %c0_50 = arith.constant 0 : index
    %c0_51 = arith.constant 0 : index
    %85 = vector.load %arg16[%c0_50, %c0_51] : memref<64x64xf32, #tpu.memory_space<vmem>>, vector<64x64xf32>
    %cst_52 = arith.constant dense<0.000000e+00> : vector<8x64xf32>
    %86 = tpu.matmul %84, %85, %cst_52 {dimension_numbers = #tpu.dot_dimension_numbers<[1], [0], [0], [1], [0, 0, 1, 1], [], []>} : vector<8x64xf32>, vector<64x64xf32>, vector<8x64xf32> -> vector<8x64xf32>
    %cst_53 = arith.constant dense<0.000000e+00> : vector<24x64xf32>
    %87 = tpu.matmul %28, %86, %cst_53 {dimension_numbers = #tpu.dot_dimension_numbers<[0], [0], [1], [1], [0, 1, 1, 1], [], []>} : vector<8x24xf32>, vector<8x64xf32>, vector<24x64xf32> -> vector<24x64xf32>
    %c0_54 = arith.constant 0 : index
    %c0_55 = arith.constant 0 : index
    %88 = vector.load %arg17[%c0_54, %c0_55] : memref<64x64xf32, #tpu.memory_space<vmem>>, vector<64x64xf32>
    %cst_56 = arith.constant dense<0.000000e+00> : vector<24x64xf32>
    %89 = tpu.matmul %87, %88, %cst_56 {dimension_numbers = #tpu.dot_dimension_numbers<[1], [0], [0], [1], [0, 0, 1, 1], [], []>} : vector<24x64xf32>, vector<64x64xf32>, vector<24x64xf32> -> vector<24x64xf32>
    %c0_57 = arith.constant 0 : index
    %c0_58 = arith.constant 0 : index
    %90 = vector.load %arg18[%c0_57, %c0_58] : memref<1x64xf32, #tpu.memory_space<vmem>>, vector<1x64xf32>
    %91 = vector.broadcast %90 : vector<1x64xf32> to vector<24x64xf32>
    %92 = arith.addf %89, %91 : vector<24x64xf32>
    %c0_59 = arith.constant 0 : index
    %c0_60 = arith.constant 0 : index
    %93 = vector.load %arg19[%c0_59, %c0_60] : memref<1x64xf32, #tpu.memory_space<vmem>>, vector<1x64xf32>
    %94 = vector.broadcast %34 : vector<24x1xf32> to vector<24x64xf32>
    %95 = vector.broadcast %93 : vector<1x64xf32> to vector<24x64xf32>
    %96 = arith.mulf %94, %95 : vector<24x64xf32>
    %97 = arith.addf %92, %96 : vector<24x64xf32>
    %c0_61 = arith.constant 0 : index
    %c0_62 = arith.constant 0 : index
    %98 = vector.load %arg20[%c0_61, %c0_62] : memref<1x64xf32, #tpu.memory_space<vmem>>, vector<1x64xf32>
    %99 = vector.broadcast %98 : vector<1x64xf32> to vector<24x64xf32>
    %100 = arith.addf %97, %99 : vector<24x64xf32>
    %cst_63 = arith.constant dense<0.000000e+00> : vector<24xf32>
    %101 = vector.multi_reduction <add>, %100, %cst_63 [1] : vector<24x64xf32> to vector<24xf32>
    %102 = vector.shape_cast %101 : vector<24xf32> to vector<24x1xf32>
    %103 = arith.mulf %100, %100 : vector<24x64xf32>
    %cst_64 = arith.constant dense<0.000000e+00> : vector<24xf32>
    %104 = vector.multi_reduction <add>, %103, %cst_64 [1] : vector<24x64xf32> to vector<24xf32>
    %105 = vector.shape_cast %104 : vector<24xf32> to vector<24x1xf32>
    %cst_65 = arith.constant 1.562500e-02 : f32
    %106 = vector.broadcast %cst_65 : f32 to vector<24x1xf32>
    %107 = arith.mulf %102, %106 : vector<24x1xf32>
    %cst_66 = arith.constant 1.562500e-02 : f32
    %108 = vector.broadcast %cst_66 : f32 to vector<24x1xf32>
    %109 = arith.mulf %105, %108 : vector<24x1xf32>
    %110 = arith.mulf %107, %107 : vector<24x1xf32>
    %111 = arith.subf %109, %110 : vector<24x1xf32>
    %cst_67 = arith.constant 0.000000e+00 : f32
    %112 = vector.broadcast %cst_67 : f32 to vector<24x1xf32>
    %113 = arith.maximumf %111, %112 : vector<24x1xf32>
    %114 = vector.broadcast %107 : vector<24x1xf32> to vector<24x64xf32>
    %115 = arith.subf %100, %114 : vector<24x64xf32>
    %cst_68 = arith.constant 9.99999974E-6 : f32
    %116 = vector.broadcast %cst_68 : f32 to vector<24x1xf32>
    %117 = arith.addf %113, %116 : vector<24x1xf32>
    %118 = math.rsqrt %117 : vector<24x1xf32>
    %119 = vector.broadcast %118 : vector<24x1xf32> to vector<24x64xf32>
    %120 = arith.mulf %115, %119 : vector<24x64xf32>
    %c0_69 = arith.constant 0 : index
    %c0_70 = arith.constant 0 : index
    %121 = vector.load %arg21[%c0_69, %c0_70] : memref<1x64xf32, #tpu.memory_space<vmem>>, vector<1x64xf32>
    %122 = vector.broadcast %121 : vector<1x64xf32> to vector<24x64xf32>
    %123 = arith.mulf %120, %122 : vector<24x64xf32>
    %c0_71 = arith.constant 0 : index
    %c0_72 = arith.constant 0 : index
    %124 = vector.load %arg22[%c0_71, %c0_72] : memref<1x64xf32, #tpu.memory_space<vmem>>, vector<1x64xf32>
    %125 = vector.broadcast %124 : vector<1x64xf32> to vector<24x64xf32>
    %126 = arith.addf %123, %125 : vector<24x64xf32>
    %cst_73 = arith.constant 0.000000e+00 : f32
    %127 = vector.broadcast %cst_73 : f32 to vector<24x64xf32>
    %128 = arith.maximumf %126, %127 : vector<24x64xf32>
    %c0_74 = arith.constant 0 : index
    %c0_75 = arith.constant 0 : index
    %129 = vector.load %arg23[%c0_74, %c0_75] : memref<64x64xf32, #tpu.memory_space<vmem>>, vector<64x64xf32>
    %cst_76 = arith.constant dense<0.000000e+00> : vector<24x64xf32>
    %130 = tpu.matmul %128, %129, %cst_76 {dimension_numbers = #tpu.dot_dimension_numbers<[1], [0], [0], [1], [0, 0, 1, 1], [], []>} : vector<24x64xf32>, vector<64x64xf32>, vector<24x64xf32> -> vector<24x64xf32>
    %cst_77 = arith.constant dense<0.000000e+00> : vector<16x64xf32>
    %131 = tpu.matmul %33, %130, %cst_77 {dimension_numbers = #tpu.dot_dimension_numbers<[1], [0], [0], [1], [0, 0, 1, 1], [], []>} : vector<16x24xf32>, vector<24x64xf32>, vector<16x64xf32> -> vector<16x64xf32>
    %132 = tpu.concatenate %131, %21 in 1 : vector<16x64xf32>, vector<16x64xf32> -> vector<16x128xf32>
    %c0_78 = arith.constant 0 : index
    %c0_79 = arith.constant 0 : index
    %133 = vector.load %arg24[%c0_78, %c0_79] : memref<128x64xf32, #tpu.memory_space<vmem>>, vector<128x64xf32>
    %cst_80 = arith.constant dense<0.000000e+00> : vector<16x64xf32>
    %134 = tpu.matmul %132, %133, %cst_80 {dimension_numbers = #tpu.dot_dimension_numbers<[1], [0], [0], [1], [0, 0, 1, 1], [], []>} : vector<16x128xf32>, vector<128x64xf32>, vector<16x64xf32> -> vector<16x64xf32>
    %cst_81 = arith.constant 0.000000e+00 : f32
    %135 = vector.broadcast %cst_81 : f32 to vector<16x64xf32>
    %136 = arith.maximumf %134, %135 : vector<16x64xf32>
    %c0_82 = arith.constant 0 : index
    %c0_83 = arith.constant 0 : index
    %137 = vector.load %arg25[%c0_82, %c0_83] : memref<64x64xf32, #tpu.memory_space<vmem>>, vector<64x64xf32>
    %cst_84 = arith.constant dense<0.000000e+00> : vector<16x64xf32>
    %138 = tpu.matmul %136, %137, %cst_84 {dimension_numbers = #tpu.dot_dimension_numbers<[1], [0], [0], [1], [0, 0, 1, 1], [], []>} : vector<16x64xf32>, vector<64x64xf32>, vector<16x64xf32> -> vector<16x64xf32>
    %c0_85 = arith.constant 0 : index
    %c0_86 = arith.constant 0 : index
    %139 = vector.load %arg26[%c0_85, %c0_86] : memref<64x64xf32, #tpu.memory_space<vmem>>, vector<64x64xf32>
    %cst_87 = arith.constant dense<0.000000e+00> : vector<16x64xf32>
    %140 = tpu.matmul %138, %139, %cst_87 {dimension_numbers = #tpu.dot_dimension_numbers<[1], [0], [0], [1], [0, 0, 1, 1], [], []>} : vector<16x64xf32>, vector<64x64xf32>, vector<16x64xf32> -> vector<16x64xf32>
    %cst_88 = arith.constant 0.000000e+00 : f32
    %141 = vector.broadcast %cst_88 : f32 to vector<16x64xf32>
    %142 = arith.maximumf %140, %141 : vector<16x64xf32>
    %cst_89 = arith.constant dense<0.000000e+00> : vector<64xf32>
    %143 = vector.multi_reduction <add>, %142, %cst_89 [0] : vector<16x64xf32> to vector<64xf32>
    %144 = vector.shape_cast %143 : vector<64xf32> to vector<1x64xf32>
    %cst_90 = arith.constant 6.250000e-02 : f32
    %145 = vector.broadcast %cst_90 : f32 to vector<1x64xf32>
    %146 = arith.mulf %144, %145 : vector<1x64xf32>
    %c0_91 = arith.constant 0 : index
    %c0_92 = arith.constant 0 : index
    %147 = vector.load %arg27[%c0_91, %c0_92] : memref<64x1xf32, #tpu.memory_space<vmem>>, vector<64x1xf32>
    %cst_93 = arith.constant dense<0.000000e+00> : vector<1x1xf32>
    %148 = tpu.matmul %146, %147, %cst_93 {dimension_numbers = #tpu.dot_dimension_numbers<[1], [0], [0], [1], [0, 0, 1, 1], [], []>} : vector<1x64xf32>, vector<64x1xf32>, vector<1x1xf32> -> vector<1x1xf32>
    %149 = arith.negf %148 : vector<1x1xf32>
    %150 = math.exp %149 : vector<1x1xf32>
    %cst_94 = arith.constant 1.000000e+00 : f32
    %151 = vector.broadcast %cst_94 : f32 to vector<1x1xf32>
    %152 = arith.addf %151, %150 : vector<1x1xf32>
    %153 = arith.divf %151, %152 : vector<1x1xf32>
    %c0_95 = arith.constant 0 : index
    %c0_96 = arith.constant 0 : index
    %154 = vector.load %arg28[%c0_95, %c0_96] : memref<1x1xf32, #tpu.memory_space<vmem>>, vector<1x1xf32>
    tpu.vector_store %arg28[%c0_95, %c0_96], %153 {strides = array<i32>} : memref<1x1xf32, #tpu.memory_space<vmem>>, vector<1x1xf32>,
    return
  }
}

</mosaic_0001>

<llo_original>
// kernel: tpu_custom_call.1
$region0: #{tpu_custom_call.1}
  #allocation0 [shape = 'u32[]', space=smem, size = 0x4, offset = 0x4, fixed_abs, tag = 'smem constant byte address 0x4 - core index']
  #allocation1 [shape = 'u32[144,128]{1,0:T(1,128)}', space=vmem, size = 0x12000, scoped, tag = 'internal scratch']
  %s0 = inlined_call_operand.vmem [shape: f32[8,1], index: 0, kind: input, shape index: {}]
  %s1 = inlined_call_operand.vmem [shape: f32[16,1], index: 1, kind: input, shape index: {}]
  %s2 = inlined_call_operand.vmem [shape: s32[2,24], index: 2, kind: input, shape index: {}]
  %s3 = inlined_call_operand.vmem [shape: f32[24,1], index: 3, kind: input, shape index: {}]
  %s4 = inlined_call_operand.hbm [shape: f32[1,64], index: 4, kind: input, shape index: {}]
  %s5 = inlined_call_operand.vmem [shape: f32[64,64], index: 5, kind: input, shape index: {}]
  %s6 = inlined_call_operand.vmem [shape: f32[1,64], index: 6, kind: input, shape index: {}]
  %s7 = inlined_call_operand.vmem [shape: f32[64,64], index: 7, kind: input, shape index: {}]
  %s8 = inlined_call_operand.vmem [shape: f32[64,64], index: 8, kind: input, shape index: {}]
  %s9 = inlined_call_operand.vmem [shape: f32[1,64], index: 9, kind: input, shape index: {}]
  %s10 = inlined_call_operand.vmem [shape: f32[1,64], index: 10, kind: input, shape index: {}]
  %s11 = inlined_call_operand.vmem [shape: f32[1,64], index: 11, kind: input, shape index: {}]
  %s12 = inlined_call_operand.hbm [shape: f32[1,64], index: 12, kind: input, shape index: {}]
  %s13 = inlined_call_operand.hbm [shape: f32[1,64], index: 13, kind: input, shape index: {}]
  %s14 = inlined_call_operand.vmem [shape: f32[64,64], index: 14, kind: input, shape index: {}]
  %s15 = inlined_call_operand.vmem [shape: f32[128,64], index: 15, kind: input, shape index: {}]
  %s16 = inlined_call_operand.vmem [shape: f32[64,64], index: 16, kind: input, shape index: {}]
  %s17 = inlined_call_operand.vmem [shape: f32[64,64], index: 17, kind: input, shape index: {}]
  %s18 = inlined_call_operand.hbm [shape: f32[1,64], index: 18, kind: input, shape index: {}]
  %s19 = inlined_call_operand.hbm [shape: f32[1,64], index: 19, kind: input, shape index: {}]
  %s20 = inlined_call_operand.hbm [shape: f32[1,64], index: 20, kind: input, shape index: {}]
  %s21 = inlined_call_operand.hbm [shape: f32[1,64], index: 21, kind: input, shape index: {}]
  %s22 = inlined_call_operand.hbm [shape: f32[1,64], index: 22, kind: input, shape index: {}]
  %s23 = inlined_call_operand.vmem [shape: f32[64,64], index: 23, kind: input, shape index: {}]
  %s24 = inlined_call_operand.vmem [shape: f32[128,64], index: 24, kind: input, shape index: {}]
  %s25 = inlined_call_operand.hbm [shape: f32[64,64], index: 25, kind: input, shape index: {}]
  %s26 = inlined_call_operand.hbm [shape: f32[64,64], index: 26, kind: input, shape index: {}]
  %s27 = inlined_call_operand.vmem [shape: f32[64,1], index: 27, kind: input, shape index: {}]
  %s28 = inlined_call_operand.hbm [shape: f32[1,1], index: 28, kind: output, shape index: {}]
  %s29 = sld [smem:[#allocation0]]
  $region162: #{tpu_custom_call.1} parent=0
    _
  %s31 = ssub.s32 1, %s29
  %s32 = scalar_select 0, %s31, %s29
  $region1: #{tpu_custom_call.1} parent=0
    #allocation2 [shape = 'u8[512]{0}', space=vmem, size = 0x400, scoped, tag = 'input window, operand 4, single buffered']
    #allocation3 [shape = 's32[1]{0}', space=sflag, size = 0x4, scoped, tag = 'scoped memory for tpu_custom_call.1']
    #allocation4 [shape = 's32[1]{0}', space=sflag, size = 0x4, scoped, tag = 'scoped memory for tpu_custom_call.1']
    #allocation5 [shape = 'u8[512]{0}', space=vmem, size = 0x400, scoped, tag = 'input window, operand 12, single buffered']
    #allocation6 [shape = 's32[1]{0}', space=sflag, size = 0x4, scoped, tag = 'scoped memory for tpu_custom_call.1']
    #allocation7 [shape = 'u8[512]{0}', space=vmem, size = 0x400, scoped, tag = 'input window, operand 13, single buffered']
    #allocation8 [shape = 'u8[512]{0}', space=vmem, size = 0x400, scoped, tag = 'input window, operand 18, single buffered']
    #allocation9 [shape = 's32[1]{0}', space=sflag, size = 0x4, scoped, tag = 'scoped memory for tpu_custom_call.1']
    #allocation10 [shape = 'u8[512]{0}', space=vmem, size = 0x400, scoped, tag = 'input window, operand 19, single buffered']
    #allocation11 [shape = 'u8[512]{0}', space=vmem, size = 0x400, scoped, tag = 'input window, operand 20, single buffered']
    #allocation12 [shape = 's32[1]{0}', space=sflag, size = 0x4, scoped, tag = 'scoped memory for tpu_custom_call.1']
    #allocation13 [shape = 'u8[512]{0}', space=vmem, size = 0x400, scoped, tag = 'input window, operand 21, single buffered']
    #allocation14 [shape = 'u8[512]{0}', space=vmem, size = 0x400, scoped, tag = 'input window, operand 22, single buffered']
    #allocation15 [shape = 's32[1]{0}', space=sflag, size = 0x4, scoped, tag = 'scoped memory for tpu_custom_call.1']
    #allocation16 [shape = 'u8[32768]{0}', space=vmem, size = 0x8000, scoped, tag = 'input window, operand 25, single buffered']
    #allocation17 [shape = 'u8[32768]{0}', space=vmem, size = 0x8000, scoped, tag = 'input window, operand 26, single buffered']
    #allocation18 [shape = 's32[1]{0}', space=sflag, size = 0x4, scoped, tag = 'scoped memory for tpu_custom_call.1']
    #allocation19 [shape = 'u8[512]{0}', space=vmem, size = 0x400, scoped, tag = 'output window, operand 0, single buffered']
    %33 = vsyncpa [#allocation3], 0
    %34 = vsyncpa [#allocation6], 0
    %35 = vsyncpa [#allocation9], 0
    %36 = vsyncpa [#allocation12], 0
    %37 = vsyncpa [#allocation15], 0
    %38 = vsyncpa [#allocation18], 0
    %39 = vsyncpa [#allocation4], 0
    // Predicated region
    $region2: #{tpu_custom_call.1} parent=1 // pred_check
      _
    $region3: #{tpu_custom_call.1} parent=1 // pred_check_branch
      %41 = sbr.rel (0) target = $region5
    $region4: #{tpu_custom_call.1} parent=1 // pred_region
      _
    $region5: #{tpu_custom_call.1} parent=1 // pred_fallthru
      _
    // Predicated region
    $region6: #{tpu_custom_call.1} parent=1 // pred_check
      _
    $region7: #{tpu_custom_call.1} parent=1 // pred_check_branch
      %43 = sbr.rel (0) target = $region9
    $region8: #{tpu_custom_call.1} parent=1 // pred_region
      _
    $region9: #{tpu_custom_call.1} parent=1 // pred_fallthru
      _
    // Predicated region
    $region10: #{tpu_custom_call.1} parent=1 // pred_check
      _
    $region11: #{tpu_custom_call.1} parent=1 // pred_check_branch
      %45 = sbr.rel (0) target = $region13
    $region12: #{tpu_custom_call.1} parent=1 // pred_region
      _
    $region13: #{tpu_custom_call.1} parent=1 // pred_fallthru
      _
    // Predicated region
    $region14: #{tpu_custom_call.1} parent=1 // pred_check
      _
    $region15: #{tpu_custom_call.1} parent=1 // pred_check_branch
      %47 = sbr.rel (0) target = $region17
    $region16: #{tpu_custom_call.1} parent=1 // pred_region
      _
    $region17: #{tpu_custom_call.1} parent=1 // pred_fallthru
      _
    // Predicated region
    $region18: #{tpu_custom_call.1} parent=1 // pred_check
      _
    $region19: #{tpu_custom_call.1} parent=1 // pred_check_branch
      %49 = sbr.rel (0) target = $region21
    $region20: #{tpu_custom_call.1} parent=1 // pred_region
      %s51 = ssub.s32 16, 16
      %52 = vsyncadd [#allocation3], %s51
      %s54 = sshll.u32 [#allocation2], 4
      %s55 = int_to_ptr.vmem [resolvable:$true] %s54
      %57 = dma.hbm_to_vmem [thread:$0]  %s4, 16, %s55, [#allocation3]
    $region21: #{tpu_custom_call.1} parent=1 // pred_fallthru
      _
    // Predicated region
    $region22: #{tpu_custom_call.1} parent=1 // pred_check
      _
    $region23: #{tpu_custom_call.1} parent=1 // pred_check_branch
      %59 = sbr.rel (0) target = $region25
    $region24: #{tpu_custom_call.1} parent=1 // pred_region
      _
    $region25: #{tpu_custom_call.1} parent=1 // pred_fallthru
      _
    // Predicated region
    $region26: #{tpu_custom_call.1} parent=1 // pred_check
      _
    $region27: #{tpu_custom_call.1} parent=1 // pred_check_branch
      %61 = sbr.rel (0) target = $region29
    $region28: #{tpu_custom_call.1} parent=1 // pred_region
      _
    $region29: #{tpu_custom_call.1} parent=1 // pred_fallthru
      _
    // Predicated region
    $region30: #{tpu_custom_call.1} parent=1 // pred_check
      _
    $region31: #{tpu_custom_call.1} parent=1 // pred_check_branch
      %63 = sbr.rel (0) target = $region33
    $region32: #{tpu_custom_call.1} parent=1 // pred_region
      _
    $region33: #{tpu_custom_call.1} parent=1 // pred_fallthru
      _
    // Predicated region
    $region34: #{tpu_custom_call.1} parent=1 // pred_check
      _
    $region35: #{tpu_custom_call.1} parent=1 // pred_check_branch
      %65 = sbr.rel (0) target = $region37
    $region36: #{tpu_custom_call.1} parent=1 // pred_region
      _
    $region37: #{tpu_custom_call.1} parent=1 // pred_fallthru
      _
    // Predicated region
    $region38: #{tpu_custom_call.1} parent=1 // pred_check
      _
    $region39: #{tpu_custom_call.1} parent=1 // pred_check_branch
      %67 = sbr.rel (0) target = $region41
    $region40: #{tpu_custom_call.1} parent=1 // pred_region
      _
    $region41: #{tpu_custom_call.1} parent=1 // pred_fallthru
      _
    // Predicated region
    $region42: #{tpu_custom_call.1} parent=1 // pred_check
      _
    $region43: #{tpu_custom_call.1} parent=1 // pred_check_branch
      %69 = sbr.rel (0) target = $region45
    $region44: #{tpu_custom_call.1} parent=1 // pred_region
      _
    $region45: #{tpu_custom_call.1} parent=1 // pred_fallthru
      _
    // Predicated region
    $region46: #{tpu_custom_call.1} parent=1 // pred_check
      _
    $region47: #{tpu_custom_call.1} parent=1 // pred_check_branch
      %71 = sbr.rel (0) target = $region49
    $region48: #{tpu_custom_call.1} parent=1 // pred_region
      _
    $region49: #{tpu_custom_call.1} parent=1 // pred_fallthru
      _
    // Predicated region
    $region50: #{tpu_custom_call.1} parent=1 // pred_check
      _
    $region51: #{tpu_custom_call.1} parent=1 // pred_check_branch
      %73 = sbr.rel (0) target = $region53
    $region52: #{tpu_custom_call.1} parent=1 // pred_region
      %s75 = ssub.s32 16, 16
      %76 = vsyncadd [#allocation6], %s75
      %s78 = sshll.u32 [#allocation5], 4
      %s79 = int_to_ptr.vmem [resolvable:$true] %s78
      %81 = dma.hbm_to_vmem [thread:$0]  %s12, 16, %s79, [#allocation6]
    $region53: #{tpu_custom_call.1} parent=1 // pred_fallthru
      _
    // Predicated region
    $region54: #{tpu_custom_call.1} parent=1 // pred_check
      _
    $region55: #{tpu_custom_call.1} parent=1 // pred_check_branch
      %83 = sbr.rel (0) target = $region57
    $region56: #{tpu_custom_call.1} parent=1 // pred_region
      %s85 = ssub.s32 16, 16
      %86 = vsyncadd [#allocation6], %s85
      %s88 = sshll.u32 [#allocation7], 4
      %s89 = int_to_ptr.vmem [resolvable:$true] %s88
      %91 = dma.hbm_to_vmem [thread:$0]  %s13, 16, %s89, [#allocation6]
    $region57: #{tpu_custom_call.1} parent=1 // pred_fallthru
      _
    // Predicated region
    $region58: #{tpu_custom_call.1} parent=1 // pred_check
      _
    $region59: #{tpu_custom_call.1} parent=1 // pred_check_branch
      %93 = sbr.rel (0) target = $region61
    $region60: #{tpu_custom_call.1} parent=1 // pred_region
      _
    $region61: #{tpu_custom_call.1} parent=1 // pred_fallthru
      _
    // Predicated region
    $region62: #{tpu_custom_call.1} parent=1 // pred_check
      _
    $region63: #{tpu_custom_call.1} parent=1 // pred_check_branch
      %95 = sbr.rel (0) target = $region65
    $region64: #{tpu_custom_call.1} parent=1 // pred_region
      _
    $region65: #{tpu_custom_call.1} parent=1 // pred_fallthru
      _
    // Predicated region
    $region66: #{tpu_custom_call.1} parent=1 // pred_check
      _
    $region67: #{tpu_custom_call.1} parent=1 // pred_check_branch
      %97 = sbr.rel (0) target = $region69
    $region68: #{tpu_custom_call.1} parent=1 // pred_region
      _
    $region69: #{tpu_custom_call.1} parent=1 // pred_fallthru
      _
    // Predicated region
    $region70: #{tpu_custom_call.1} parent=1 // pred_check
      _
    $region71: #{tpu_custom_call.1} parent=1 // pred_check_branch
      %99 = sbr.rel (0) target = $region73
    $region72: #{tpu_custom_call.1} parent=1 // pred_region
      _
    $region73: #{tpu_custom_call.1} parent=1 // pred_fallthru
      _
    // Predicated region
    $region74: #{tpu_custom_call.1} parent=1 // pred_check
      _
    $region75: #{tpu_custom_call.1} parent=1 // pred_check_branch
      %101 = sbr.rel (0) target = $region77
    $region76: #{tpu_custom_call.1} parent=1 // pred_region
      %s103 = ssub.s32 16, 16
      %104 = vsyncadd [#allocation9], %s103
      %s106 = sshll.u32 [#allocation8], 4
      %s107 = int_to_ptr.vmem [resolvable:$true] %s106
      %109 = dma.hbm_to_vmem [thread:$0]  %s18, 16, %s107, [#allocation9]
    $region77: #{tpu_custom_call.1} parent=1 // pred_fallthru
      _
    // Predicated region
    $region78: #{tpu_custom_call.1} parent=1 // pred_check
      _
    $region79: #{tpu_custom_call.1} parent=1 // pred_check_branch
      %111 = sbr.rel (0) target = $region81
    $region80: #{tpu_custom_call.1} parent=1 // pred_region
      %s113 = ssub.s32 16, 16
      %114 = vsyncadd [#allocation9], %s113
      %s116 = sshll.u32 [#allocation10], 4
      %s117 = int_to_ptr.vmem [resolvable:$true] %s116
      %119 = dma.hbm_to_vmem [thread:$0]  %s19, 16, %s117, [#allocation9]
    $region81: #{tpu_custom_call.1} parent=1 // pred_fallthru
      _
    // Predicated region
    $region82: #{tpu_custom_call.1} parent=1 // pred_check
      _
    $region83: #{tpu_custom_call.1} parent=1 // pred_check_branch
      %121 = sbr.rel (0) target = $region85
    $region84: #{tpu_custom_call.1} parent=1 // pred_region
      %s123 = ssub.s32 16, 16
      %124 = vsyncadd [#allocation12], %s123
      %s126 = sshll.u32 [#allocation11], 4
      %s127 = int_to_ptr.vmem [resolvable:$true] %s126
      %129 = dma.hbm_to_vmem [thread:$0]  %s20, 16, %s127, [#allocation12]
    $region85: #{tpu_custom_call.1} parent=1 // pred_fallthru
      _
    // Predicated region
    $region86: #{tpu_custom_call.1} parent=1 // pred_check
      _
    $region87: #{tpu_custom_call.1} parent=1 // pred_check_branch
      %131 = sbr.rel (0) target = $region89
    $region88: #{tpu_custom_call.1} parent=1 // pred_region
      %s133 = ssub.s32 16, 16
      %134 = vsyncadd [#allocation12], %s133
      %s136 = sshll.u32 [#allocation13], 4
      %s137 = int_to_ptr.vmem [resolvable:$true] %s136
      %139 = dma.hbm_to_vmem [thread:$0]  %s21, 16, %s137, [#allocation12]
    $region89: #{tpu_custom_call.1} parent=1 // pred_fallthru
      _
    // Predicated region
    $region90: #{tpu_custom_call.1} parent=1 // pred_check
      _
    $region91: #{tpu_custom_call.1} parent=1 // pred_check_branch
      %141 = sbr.rel (0) target = $region93
    $region92: #{tpu_custom_call.1} parent=1 // pred_region
      %s143 = ssub.s32 16, 16
      %144 = vsyncadd [#allocation15], %s143
      %s146 = sshll.u32 [#allocation14], 4
      %s147 = int_to_ptr.vmem [resolvable:$true] %s146
      %149 = dma.hbm_to_vmem [thread:$0]  %s22, 16, %s147, [#allocation15]
    $region93: #{tpu_custom_call.1} parent=1 // pred_fallthru
      _
    // Predicated region
    $region94: #{tpu_custom_call.1} parent=1 // pred_check
      _
    $region95: #{tpu_custom_call.1} parent=1 // pred_check_branch
      %151 = sbr.rel (0) target = $region97
    $region96: #{tpu_custom_call.1} parent=1 // pred_region
      _
    $region97: #{tpu_custom_call.1} parent=1 // pred_fallthru
      _
    // Predicated region
    $region98: #{tpu_custom_call.1} parent=1 // pred_check
      _
    $region99: #{tpu_custom_call.1} parent=1 // pred_check_branch
      %153 = sbr.rel (0) target = $region101
    $region100: #{tpu_custom_call.1} parent=1 // pred_region
      _
    $region101: #{tpu_custom_call.1} parent=1 // pred_fallthru
      _
    // Predicated region
    $region102: #{tpu_custom_call.1} parent=1 // pred_check
      _
    $region103: #{tpu_custom_call.1} parent=1 // pred_check_branch
      %155 = sbr.rel (0) target = $region105
    $region104: #{tpu_custom_call.1} parent=1 // pred_region
      %s157 = ssub.s32 1024, 1024
      %158 = vsyncadd [#allocation15], %s157
      %s159 = sshll.u32 [#allocation16], 4
      %s160 = int_to_ptr.vmem [resolvable:$true] %s159
      %165 = dma.hbm_to_vmem [thread:$0]  %s25, 1024, %s160, [#allocation15], 128, 128, 8
    $region105: #{tpu_custom_call.1} parent=1 // pred_fallthru
      _
    // Predicated region
    $region106: #{tpu_custom_call.1} parent=1 // pred_check
      _
    $region107: #{tpu_custom_call.1} parent=1 // pred_check_branch
      %167 = sbr.rel (0) target = $region109
    $region108: #{tpu_custom_call.1} parent=1 // pred_region
      %s169 = ssub.s32 1024, 1024
      %170 = vsyncadd [#allocation18], %s169
      %s171 = sshll.u32 [#allocation17], 4
      %s172 = int_to_ptr.vmem [resolvable:$true] %s171
      %177 = dma.hbm_to_vmem [thread:$0]  %s26, 1024, %s172, [#allocation18], 128, 128, 8
    $region109: #{tpu_custom_call.1} parent=1 // pred_fallthru
      _
    // Predicated region
    $region110: #{tpu_custom_call.1} parent=1 // pred_check
      _
    $region111: #{tpu_custom_call.1} parent=1 // pred_check_branch
      %179 = sbr.rel (0) target = $region113
    $region112: #{tpu_custom_call.1} parent=1 // pred_region
      _
    $region113: #{tpu_custom_call.1} parent=1 // pred_fallthru
      _
    // Predicated region
    $region114: #{tpu_custom_call.1} parent=1 // pred_check
      _
    $region115: #{tpu_custom_call.1} parent=1 // pred_check_branch
      %181 = sbr.rel (0) target = $region117
    $region116: #{tpu_custom_call.1} parent=1 // pred_region
      %182 = dma.done [#allocation3], 16
    $region117: #{tpu_custom_call.1} parent=1 // pred_fallthru
      _
    // Predicated region
    $region118: #{tpu_custom_call.1} parent=1 // pred_check
      _
    $region119: #{tpu_custom_call.1} parent=1 // pred_check_branch
      %184 = sbr.rel (0) target = $region121
    $region120: #{tpu_custom_call.1} parent=1 // pred_region
      %185 = dma.done [#allocation6], 16
    $region121: #{tpu_custom_call.1} parent=1 // pred_fallthru
      _
    // Predicated region
    $region122: #{tpu_custom_call.1} parent=1 // pred_check
      _
    $region123: #{tpu_custom_call.1} parent=1 // pred_check_branch
      %187 = sbr.rel (0) target = $region125
    $region124: #{tpu_custom_call.1} parent=1 // pred_region
      %188 = dma.done [#allocation6], 16
    $region125: #{tpu_custom_call.1} parent=1 // pred_fallthru
      _
    // Predicated region
    $region126: #{tpu_custom_call.1} parent=1 // pred_check
      _
    $region127: #{tpu_custom_call.1} parent=1 // pred_check_branch
      %190 = sbr.rel (0) target = $region129
    $region128: #{tpu_custom_call.1} parent=1 // pred_region
      %191 = dma.done [#allocation9], 16
    $region129: #{tpu_custom_call.1} parent=1 // pred_fallthru
      _
    // Predicated region
    $region130: #{tpu_custom_call.1} parent=1 // pred_check
      _
    $region131: #{tpu_custom_call.1} parent=1 // pred_check_branch
      %193 = sbr.rel (0) target = $region133
    $region132: #{tpu_custom_call.1} parent=1 // pred_region
      %194 = dma.done [#allocation9], 16
    $region133: #{tpu_custom_call.1} parent=1 // pred_fallthru
      _
    // Predicated region
    $region134: #{tpu_custom_call.1} parent=1 // pred_check
      _
    $region135: #{tpu_custom_call.1} parent=1 // pred_check_branch
      %196 = sbr.rel (0) target = $region137
    $region136: #{tpu_custom_call.1} parent=1 // pred_region
      %197 = dma.done [#allocation12], 16
    $region137: #{tpu_custom_call.1} parent=1 // pred_fallthru
      _
    // Predicated region
    $region138: #{tpu_custom_call.1} parent=1 // pred_check
      _
    $region139: #{tpu_custom_call.1} parent=1 // pred_check_branch
      %199 = sbr.rel (0) target = $region141
    $region140: #{tpu_custom_call.1} parent=1 // pred_region
      %200 = dma.done [#allocation12], 16
    $region141: #{tpu_custom_call.1} parent=1 // pred_fallthru
      _
    // Predicated region
    $region142: #{tpu_custom_call.1} parent=1 // pred_check
      _
    $region143: #{tpu_custom_call.1} parent=1 // pred_check_branch
      %202 = sbr.rel (0) target = $region145
    $region144: #{tpu_custom_call.1} parent=1 // pred_region
      %203 = dma.done [#allocation15], 16
    $region145: #{tpu_custom_call.1} parent=1 // pred_fallthru
      _
    // Predicated region
    $region146: #{tpu_custom_call.1} parent=1 // pred_check
      _
    $region147: #{tpu_custom_call.1} parent=1 // pred_check_branch
      %205 = sbr.rel (0) target = $region149
    $region148: #{tpu_custom_call.1} parent=1 // pred_region
      %206 = dma.done [#allocation15], 1024
    $region149: #{tpu_custom_call.1} parent=1 // pred_fallthru
      _
    // Predicated region
    $region150: #{tpu_custom_call.1} parent=1 // pred_check
      _
    $region151: #{tpu_custom_call.1} parent=1 // pred_check_branch
      %208 = sbr.rel (0) target = $region153
    $region152: #{tpu_custom_call.1} parent=1 // pred_region
      %209 = dma.done [#allocation18], 1024
    $region153: #{tpu_custom_call.1} parent=1 // pred_fallthru
      _
    %v210 = vld [vmem:[%s0] sm:$0xff]
    %v211 = vld [vmem:[#allocation2] sm:$0x1]
    %213 = vset.pattern.permute.xlu0 0
    %214 = vperm.xlu0 %213, %v210
    %v215 = vpop.permute.xlu0 %214
    %v218 = vlaneseq
    %v219 = vshrl.u32 %v218, 7
    %v220 = vsub.s32 0, %v219
    %v221 = vrot.slane %v211, %v220
    %v223 = vmul.f32 %v215, %v221
    %v224 = vmax.f32 %v223, 0.0
    %v225 = vld [vmem:[%s5] sm:$0xff]
    %v226 = vld [vmem:[%s5 + $0x8] sm:$0xff]
    %v227 = vld [vmem:[%s5 + $0x10] sm:$0xff]
    %v228 = vld [vmem:[%s5 + $0x18] sm:$0xff]
    %v229 = vld [vmem:[%s5 + $0x20] sm:$0xff]
    %v230 = vld [vmem:[%s5 + $0x28] sm:$0xff]
    %v231 = vld [vmem:[%s5 + $0x30] sm:$0xff]
    %v232 = vld [vmem:[%s5 + $0x38] sm:$0xff]
    %vm233 = vcmask 523264
    %v235 = vsel %vm233, %v224, 0
    %237 = vmatprep.subr.mxu0 0.0
    %238 = vmatpush1.msra.mxu0 %v225
    %239 = vmatprep.subr.mxu0 0.0
    %240 = vmatpush1.msra.mxu0 %v226
    %241 = vmatprep.subr.mxu0 0.0
    %242 = vmatpush1.msra.mxu0 %v227
    %243 = vmatprep.subr.mxu0 0.0
    %244 = vmatpush1.msra.mxu0 %v228
    %245 = vmatprep.subr.mxu0 0.0
    %246 = vmatpush1.msra.mxu0 %v229
    %247 = vmatprep.subr.mxu0 0.0
    %248 = vmatpush1.msra.mxu0 %v230
    %249 = vmatprep.subr.mxu0 0.0
    %250 = vmatpush1.msra.mxu0 %v231
    %251 = vmatprep.subr.mxu0 0.0
    %252 = vmatpush1.msra.mxu0 %v232
    %253 = vmatprep.subr.mxu0 0.0
    %254 = vmatpush1.msra.mxu0 0.0
    %255 = vmatprep.subr.mxu0 0.0
    %256 = vmatpush1.msra.mxu0 0.0
    %257 = vmatprep.subr.mxu0 0.0
    %258 = vmatpush1.msra.mxu0 0.0
    %259 = vmatprep.subr.mxu0 0.0
    %260 = vmatpush1.msra.mxu0 0.0
    %261 = vmatprep.subr.mxu0 0.0
    %262 = vmatpush1.msra.mxu0 0.0
    %263 = vmatprep.subr.mxu0 0.0
    %264 = vmatpush1.msra.mxu0 0.0
    %265 = vmatprep.subr.mxu0 0.0
    %266 = vmatpush1.msra.mxu0 0.0
    %267 = vmatprep.subr.mxu0 0.0
    %268 = vmatpush1.msra.mxu0 0.0
    %269 = vmatprep.subr.mxu0 0.0
    %270 = vmatpush1.msra.mxu0 0.0
    %271 = vmatprep.subr.mxu0 0.0
    %272 = vmatpush1.msra.mxu0 0.0
    %273 = vmatprep.subr.mxu0 0.0
    %274 = vmatpush1.msra.mxu0 0.0
    %275 = vmatprep.subr.mxu0 0.0
    %276 = vmatpush1.msra.mxu0 0.0
    %277 = vmatprep.subr.mxu0 0.0
    %278 = vmatpush1.msra.mxu0 0.0
    %279 = vmatprep.subr.mxu0 0.0
    %280 = vmatpush1.msra.mxu0 0.0
    %281 = vmatprep.subr.mxu0 0.0
    %282 = vmatpush1.msra.mxu0 0.0
    %283 = vmatprep.subr.mxu0 0.0
    %284 = vmatpush1.msra.mxu0 0.0
    %285 = vmatprep.subr.mxu0 0.0
    %286 = vmatpush1.msra.mxu0 0.0
    %287 = vmatprep.subr.mxu0 0.0
    %288 = vmatpush1.msra.mxu0 0.0
    %289 = vmatprep.subr.mxu0 0.0
    %290 = vmatpush1.msra.mxu0 0.0
    %291 = vmatprep.subr.mxu0 0.0
    %292 = vmatpush1.msra.mxu0 0.0
    %293 = vmatprep.subr.mxu0 0.0
    %294 = vmatpush1.msra.mxu0 0.0
    %295 = vmatprep.subr.mxu0 0.0
    %296 = vmatpush1.msra.mxu0 0.0
    %297 = vmatprep.subr.mxu0 0.0
    %298 = vmatpush1.msra.mxu0 0.0
    %299 = vmatprep.subr.mxu0 0.0
    %300 = vmatpush1.msra.mxu0 0.0
    %301 = vmatprep.mubr.f32.mxu0 0.0
    %302 = vmatmul.mubr.f32.gmra.mrb[0].mxu0 %v235
    %v303 = vpop.f32.mrb[0].mxu0
    %v304 = vadd.f32 0.0, %v303
    %v305 = vpop.f32.mrb[0].mxu0
    %306 = vdwg.mxu0
    %v307 = vmax.f32 %v304, 0.0
    %v308 = vld [vmem:[%s1] sm:$0xff]
    %v309 = vld [vmem:[%s1 + $0x8] sm:$0xff]
    %v310 = vld [vmem:[%s6] sm:$0x1]
    %312 = vset.pattern.permute.xlu0 0
    %313 = vperm.xlu0 %312, %v308
    %v314 = vpop.permute.xlu0 %313
    %317 = vset.pattern.permute.xlu0 0
    %318 = vperm.xlu0 %317, %v309
    %v319 = vpop.permute.xlu0 %318
    %v322 = vlaneseq
    %v323 = vshrl.u32 %v322, 7
    %v324 = vsub.s32 0, %v323
    %v325 = vrot.slane %v310, %v324
    %v327 = vmul.f32 %v314, %v325
    %v328 = vmul.f32 %v319, %v325
    %v329 = vmax.f32 %v327, 0.0
    %v330 = vmax.f32 %v328, 0.0
    %v331 = vld [vmem:[%s7] sm:$0xff]
    %v332 = vld [vmem:[%s7 + $0x8] sm:$0xff]
    %v333 = vld [vmem:[%s7 + $0x10] sm:$0xff]
    %v334 = vld [vmem:[%s7 + $0x18] sm:$0xff]
    %v335 = vld [vmem:[%s7 + $0x20] sm:$0xff]
    %v336 = vld [vmem:[%s7 + $0x28] sm:$0xff]
    %v337 = vld [vmem:[%s7 + $0x30] sm:$0xff]
    %v338 = vld [vmem:[%s7 + $0x38] sm:$0xff]
    %v340 = vsel %vm233, %v329, 0
    %v343 = vsel %vm233, %v330, 0
    %345 = vmatprep.subr.mxu0 0.0
    %346 = vmatpush1.msra.mxu0 %v331
    %347 = vmatprep.subr.mxu0 0.0
    %348 = vmatpush1.msra.mxu0 %v332
    %349 = vmatprep.subr.mxu0 0.0
    %350 = vmatpush1.msra.mxu0 %v333
    %351 = vmatprep.subr.mxu0 0.0
    %352 = vmatpush1.msra.mxu0 %v334
    %353 = vmatprep.subr.mxu0 0.0
    %354 = vmatpush1.msra.mxu0 %v335
    %355 = vmatprep.subr.mxu0 0.0
    %356 = vmatpush1.msra.mxu0 %v336
    %357 = vmatprep.subr.mxu0 0.0
    %358 = vmatpush1.msra.mxu0 %v337
    %359 = vmatprep.subr.mxu0 0.0
    %360 = vmatpush1.msra.mxu0 %v338
    %361 = vmatprep.subr.mxu0 0.0
    %362 = vmatpush1.msra.mxu0 0.0
    %363 = vmatprep.subr.mxu0 0.0
    %364 = vmatpush1.msra.mxu0 0.0
    %365 = vmatprep.subr.mxu0 0.0
    %366 = vmatpush1.msra.mxu0 0.0
    %367 = vmatprep.subr.mxu0 0.0
    %368 = vmatpush1.msra.mxu0 0.0
    %369 = vmatprep.subr.mxu0 0.0
    %370 = vmatpush1.msra.mxu0 0.0
    %371 = vmatprep.subr.mxu0 0.0
    %372 = vmatpush1.msra.mxu0 0.0
    %373 = vmatprep.subr.mxu0 0.0
    %374 = vmatpush1.msra.mxu0 0.0
    %375 = vmatprep.subr.mxu0 0.0
    %376 = vmatpush1.msra.mxu0 0.0
    %377 = vmatprep.subr.mxu0 0.0
    %378 = vmatpush1.msra.mxu0 0.0
    %379 = vmatprep.subr.mxu0 0.0
    %380 = vmatpush1.msra.mxu0 0.0
    %381 = vmatprep.subr.mxu0 0.0
    %382 = vmatpush1.msra.mxu0 0.0
    %383 = vmatprep.subr.mxu0 0.0
    %384 = vmatpush1.msra.mxu0 0.0
    %385 = vmatprep.subr.mxu0 0.0
    %386 = vmatpush1.msra.mxu0 0.0
    %387 = vmatprep.subr.mxu0 0.0
    %388 = vmatpush1.msra.mxu0 0.0
    %389 = vmatprep.subr.mxu0 0.0
    %390 = vmatpush1.msra.mxu0 0.0
    %391 = vmatprep.subr.mxu0 0.0
    %392 = vmatpush1.msra.mxu0 0.0
    %393 = vmatprep.subr.mxu0 0.0
    %394 = vmatpush1.msra.mxu0 0.0
    %395 = vmatprep.subr.mxu0 0.0
    %396 = vmatpush1.msra.mxu0 0.0
    %397 = vmatprep.subr.mxu0 0.0
    %398 = vmatpush1.msra.mxu0 0.0
    %399 = vmatprep.subr.mxu0 0.0
    %400 = vmatpush1.msra.mxu0 0.0
    %401 = vmatprep.subr.mxu0 0.0
    %402 = vmatpush1.msra.mxu0 0.0
    %403 = vmatprep.subr.mxu0 0.0
    %404 = vmatpush1.msra.mxu0 0.0
    %405 = vmatprep.subr.mxu0 0.0
    %406 = vmatpush1.msra.mxu0 0.0
    %407 = vmatprep.subr.mxu0 0.0
    %408 = vmatpush1.msra.mxu0 0.0
    %409 = vmatprep.mubr.f32.mxu0 0.0
    %410 = vmatmul.mubr.f32.gmra.mrb[0].mxu0 %v340
    %v411 = vpop.f32.mrb[0].mxu0
    %v412 = vadd.f32 0.0, %v411
    %v413 = vpop.f32.mrb[0].mxu0
    %414 = vmatprep.mubr.f32.mxu0 0.0
    %415 = vmatmul.mubr.f32.gmra.mrb[0].mxu0 %v343
    %v416 = vpop.f32.mrb[0].mxu0
    %v417 = vadd.f32 0.0, %v416
    %v418 = vpop.f32.mrb[0].mxu0
    %419 = vdwg.mxu0
    %v420 = vmax.f32 %v412, 0.0
    %v421 = vmax.f32 %v417, 0.0
    %v422 = vld [vmem:[%s2] sm:$0x1]
    %v423 = vld [vmem:[%s2 + $0x1] sm:$0x1]
    %v424 = vlaneseq
    %v425 = vshrl.u32 %v424, 7
    %v426 = vlaneseq
    %v427 = vshrl.u32 %v426, 7
    %v428 = vsub.s32 0, %v427
    %v429 = vrot.slane %v422, %v428
    %vm430 = vcmp.eq.s32.totalorder %v425, %v429
    %v431 = vsel %vm430, 1, 0
    %v432 = vcvt.s32.f32 %v431
    %v433 = vadd.s32 %v425, 8
    %v434 = vlaneseq
    %v435 = vshrl.u32 %v434, 7
    %v436 = vsub.s32 0, %v435
    %v437 = vrot.slane %v423, %v436
    %vm438 = vcmp.eq.s32.totalorder %v425, %v437
    %vm439 = vcmp.eq.s32.totalorder %v433, %v437
    %v440 = vsel %vm438, 1, 0
    %v441 = vsel %vm439, 1, 0
    %v442 = vcvt.s32.f32 %v440
    %v443 = vcvt.s32.f32 %v441
    %v444 = vld [vmem:[%s3] sm:$0xff]
    %v445 = vld [vmem:[%s3 + $0x8] sm:$0xff]
    %v446 = vld [vmem:[%s3 + $0x10] sm:$0xff]
    %447 = vxpose.xlu0.b32.start [1/16] %v442, 128
    %448 = vxpose.xlu0.b32.cont [2/16] %v443, 128
    %449 = vxpose.xlu0.b32.cont [3/16] 0.0, 128
    %450 = vxpose.xlu0.b32.cont [4/16] 0.0, 128
    %451 = vxpose.xlu0.b32.cont [5/16] 0.0, 128
    %452 = vxpose.xlu0.b32.cont [6/16] 0.0, 128
    %453 = vxpose.xlu0.b32.cont [7/16] 0.0, 128
    %454 = vxpose.xlu0.b32.cont [8/16] 0.0, 128
    %455 = vxpose.xlu0.b32.cont [9/16] 0.0, 128
    %456 = vxpose.xlu0.b32.cont [10/16] 0.0, 128
    %457 = vxpose.xlu0.b32.cont [11/16] 0.0, 128
    %458 = vxpose.xlu0.b32.cont [12/16] 0.0, 128
    %459 = vxpose.xlu0.b32.cont [13/16] 0.0, 128
    %460 = vxpose.xlu0.b32.cont [14/16] 0.0, 128
    %461 = vxpose.xlu0.b32.cont [15/16] 0.0, 128
    %462 = vxpose.xlu0.b32.end [16/16] 0.0, 128
    %v463 = vpop.trf.xlu0
    %v464 = vpop.trf.xlu0
    %v465 = vpop.trf.xlu0
    %v466 = vpop.trf.xlu0
    %v467 = vpop.trf.xlu0
    %v468 = vpop.trf.xlu0
    %v469 = vpop.trf.xlu0
    %v470 = vpop.trf.xlu0
    %v471 = vpop.trf.xlu0
    %v472 = vpop.trf.xlu0
    %v473 = vpop.trf.xlu0
    %v474 = vpop.trf.xlu0
    %v475 = vpop.trf.xlu0
    %v476 = vpop.trf.xlu0
    %v477 = vpop.trf.xlu0
    %v478 = vpop.trf.xlu0
    %vm479 = vcmask 130048
    %v481 = vsel %vm479, %v463, 0
    %v484 = vsel %vm479, %v464, 0
    %v487 = vsel %vm479, %v465, 0
    %489 = vmatprep.subr.mxu0 0.0
    %490 = vmatpush1.msra.mxu0 %v420
    %491 = vmatprep.subr.mxu0 0.0
    %492 = vmatpush1.msra.mxu0 %v421
    %493 = vmatprep.subr.mxu0 0.0
    %494 = vmatpush1.msra.mxu0 0.0
    %495 = vmatprep.subr.mxu0 0.0
    %496 = vmatpush1.msra.mxu0 0.0
    %497 = vmatprep.subr.mxu0 0.0
    %498 = vmatpush1.msra.mxu0 0.0
    %499 = vmatprep.subr.mxu0 0.0
    %500 = vmatpush1.msra.mxu0 0.0
    %501 = vmatprep.subr.mxu0 0.0
    %502 = vmatpush1.msra.mxu0 0.0
    %503 = vmatprep.subr.mxu0 0.0
    %504 = vmatpush1.msra.mxu0 0.0
    %505 = vmatprep.subr.mxu0 0.0
    %506 = vmatpush1.msra.mxu0 0.0
    %507 = vmatprep.subr.mxu0 0.0
    %508 = vmatpush1.msra.mxu0 0.0
    %509 = vmatprep.subr.mxu0 0.0
    %510 = vmatpush1.msra.mxu0 0.0
    %511 = vmatprep.subr.mxu0 0.0
    %512 = vmatpush1.msra.mxu0 0.0
    %513 = vmatprep.subr.mxu0 0.0
    %514 = vmatpush1.msra.mxu0 0.0
    %515 = vmatprep.subr.mxu0 0.0
    %516 = vmatpush1.msra.mxu0 0.0
    %517 = vmatprep.subr.mxu0 0.0
    %518 = vmatpush1.msra.mxu0 0.0
    %519 = vmatprep.subr.mxu0 0.0
    %520 = vmatpush1.msra.mxu0 0.0
    %521 = vmatprep.subr.mxu0 0.0
    %522 = vmatpush1.msra.mxu0 0.0
    %523 = vmatprep.subr.mxu0 0.0
    %524 = vmatpush1.msra.mxu0 0.0
    %525 = vmatprep.subr.mxu0 0.0
    %526 = vmatpush1.msra.mxu0 0.0
    %527 = vmatprep.subr.mxu0 0.0
    %528 = vmatpush1.msra.mxu0 0.0
    %529 = vmatprep.subr.mxu0 0.0
    %530 = vmatpush1.msra.mxu0 0.0
    %531 = vmatprep.subr.mxu0 0.0
    %532 = vmatpush1.msra.mxu0 0.0
    %533 = vmatprep.subr.mxu0 0.0
    %534 = vmatpush1.msra.mxu0 0.0
    %535 = vmatprep.subr.mxu0 0.0
    %536 = vmatpush1.msra.mxu0 0.0
    %537 = vmatprep.subr.mxu0 0.0
    %538 = vmatpush1.msra.mxu0 0.0
    %539 = vmatprep.subr.mxu0 0.0
    %540 = vmatpush1.msra.mxu0 0.0
    %541 = vmatprep.subr.mxu0 0.0
    %542 = vmatpush1.msra.mxu0 0.0
    %543 = vmatprep.subr.mxu0 0.0
    %544 = vmatpush1.msra.mxu0 0.0
    %545 = vmatprep.subr.mxu0 0.0
    %546 = vmatpush1.msra.mxu0 0.0
    %547 = vmatprep.subr.mxu0 0.0
    %548 = vmatpush1.msra.mxu0 0.0
    %549 = vmatprep.subr.mxu0 0.0
    %550 = vmatpush1.msra.mxu0 0.0
    %551 = vmatprep.subr.mxu0 0.0
    %552 = vmatpush1.msra.mxu0 0.0
    %553 = vmatprep.mubr.f32.mxu0 0.0
    %554 = vmatmul.mubr.f32.gmra.mrb[0].mxu0 %v481
    %v555 = vpop.f32.mrb[0].mxu0
    %v556 = vadd.f32 0.0, %v555
    %v557 = vpop.f32.mrb[0].mxu0
    %558 = vmatprep.mubr.f32.mxu0 0.0
    %559 = vmatmul.mubr.f32.gmra.mrb[0].mxu0 %v484
    %v560 = vpop.f32.mrb[0].mxu0
    %v561 = vadd.f32 0.0, %v560
    %v562 = vpop.f32.mrb[0].mxu0
    %563 = vmatprep.mubr.f32.mxu0 0.0
    %564 = vmatmul.mubr.f32.gmra.mrb[0].mxu0 %v487
    %v565 = vpop.f32.mrb[0].mxu0
    %v566 = vadd.f32 0.0, %v565
    %v567 = vpop.f32.mrb[0].mxu0
    %568 = vdwg.mxu0
    %v569 = vld [vmem:[%s8] sm:$0xff]
    %v570 = vld [vmem:[%s8 + $0x8] sm:$0xff]
    %v571 = vld [vmem:[%s8 + $0x10] sm:$0xff]
    %v572 = vld [vmem:[%s8 + $0x18] sm:$0xff]
    %v573 = vld [vmem:[%s8 + $0x20] sm:$0xff]
    %v574 = vld [vmem:[%s8 + $0x28] sm:$0xff]
    %v575 = vld [vmem:[%s8 + $0x30] sm:$0xff]
    %v576 = vld [vmem:[%s8 + $0x38] sm:$0xff]
    %v577 = vld [vmem:[%s9] sm:$0x1]
    %v579 = vlaneseq
    %v580 = vshrl.u32 %v579, 7
    %v581 = vsub.s32 0, %v580
    %v582 = vrot.slane %v577, %v581
    %v585 = vsel %vm233, %v556, 0
    %v588 = vsel %vm233, %v561, 0
    %v591 = vsel %vm233, %v566, 0
    %593 = vmatprep.subr.mxu0 0.0
    %594 = vmatpush1.msra.mxu0 %v569
    %595 = vmatprep.subr.mxu0 0.0
    %596 = vmatpush1.msra.mxu0 %v570
    %597 = vmatprep.subr.mxu0 0.0
    %598 = vmatpush1.msra.mxu0 %v571
    %599 = vmatprep.subr.mxu0 0.0
    %600 = vmatpush1.msra.mxu0 %v572
    %601 = vmatprep.subr.mxu0 0.0
    %602 = vmatpush1.msra.mxu0 %v573
    %603 = vmatprep.subr.mxu0 0.0
    %604 = vmatpush1.msra.mxu0 %v574
    %605 = vmatprep.subr.mxu0 0.0
    %606 = vmatpush1.msra.mxu0 %v575
    %607 = vmatprep.subr.mxu0 0.0
    %608 = vmatpush1.msra.mxu0 %v576
    %609 = vmatprep.subr.mxu0 0.0
    %610 = vmatpush1.msra.mxu0 0.0
    %611 = vmatprep.subr.mxu0 0.0
    %612 = vmatpush1.msra.mxu0 0.0
    %613 = vmatprep.subr.mxu0 0.0
    %614 = vmatpush1.msra.mxu0 0.0
    %615 = vmatprep.subr.mxu0 0.0
    %616 = vmatpush1.msra.mxu0 0.0
    %617 = vmatprep.subr.mxu0 0.0
    %618 = vmatpush1.msra.mxu0 0.0
    %619 = vmatprep.subr.mxu0 0.0
    %620 = vmatpush1.msra.mxu0 0.0
    %621 = vmatprep.subr.mxu0 0.0
    %622 = vmatpush1.msra.mxu0 0.0
    %623 = vmatprep.subr.mxu0 0.0
    %624 = vmatpush1.msra.mxu0 0.0
    %625 = vmatprep.subr.mxu0 0.0
    %626 = vmatpush1.msra.mxu0 0.0
    %627 = vmatprep.subr.mxu0 0.0
    %628 = vmatpush1.msra.mxu0 0.0
    %629 = vmatprep.subr.mxu0 0.0
    %630 = vmatpush1.msra.mxu0 0.0
    %631 = vmatprep.subr.mxu0 0.0
    %632 = vmatpush1.msra.mxu0 0.0
    %633 = vmatprep.subr.mxu0 0.0
    %634 = vmatpush1.msra.mxu0 0.0
    %635 = vmatprep.subr.mxu0 0.0
    %636 = vmatpush1.msra.mxu0 0.0
    %637 = vmatprep.subr.mxu0 0.0
    %638 = vmatpush1.msra.mxu0 0.0
    %639 = vmatprep.subr.mxu0 0.0
    %640 = vmatpush1.msra.mxu0 0.0
    %641 = vmatprep.subr.mxu0 0.0
    %642 = vmatpush1.msra.mxu0 0.0
    %643 = vmatprep.subr.mxu0 0.0
    %644 = vmatpush1.msra.mxu0 0.0
    %645 = vmatprep.subr.mxu0 0.0
    %646 = vmatpush1.msra.mxu0 0.0
    %647 = vmatprep.subr.mxu0 0.0
    %648 = vmatpush1.msra.mxu0 0.0
    %649 = vmatprep.subr.mxu0 0.0
    %650 = vmatpush1.msra.mxu0 0.0
    %651 = vmatprep.subr.mxu0 0.0
    %652 = vmatpush1.msra.mxu0 0.0
    %653 = vmatprep.subr.mxu0 0.0
    %654 = vmatpush1.msra.mxu0 0.0
    %655 = vmatprep.subr.mxu0 0.0
    %656 = vmatpush1.msra.mxu0 0.0
    %657 = vmatprep.mubr.f32.mxu0 0.0
    %658 = vmatmul.mubr.f32.gmra.mrb[0].mxu0 %v585
    %v659 = vpop.f32.mrb[0].mxu0
    %v660 = vadd.f32 %v582, %v659
    %v661 = vpop.f32.mrb[0].mxu0
    %662 = vmatprep.mubr.f32.mxu0 0.0
    %663 = vmatmul.mubr.f32.gmra.mrb[0].mxu0 %v588
    %v664 = vpop.f32.mrb[0].mxu0
    %v665 = vadd.f32 %v582, %v664
    %v666 = vpop.f32.mrb[0].mxu0
    %667 = vmatprep.mubr.f32.mxu0 0.0
    %668 = vmatmul.mubr.f32.gmra.mrb[0].mxu0 %v591
    %v669 = vpop.f32.mrb[0].mxu0
    %v670 = vadd.f32 %v582, %v669
    %v671 = vpop.f32.mrb[0].mxu0
    %672 = vdwg.mxu0
    %v673 = vld [vmem:[%s10] sm:$0x1]
    %675 = vset.pattern.permute.xlu0 0
    %676 = vperm.xlu0 %675, %v444
    %v677 = vpop.permute.xlu0 %676
    %680 = vset.pattern.permute.xlu0 0
    %681 = vperm.xlu0 %680, %v445
    %v682 = vpop.permute.xlu0 %681
    %685 = vset.pattern.permute.xlu0 0
    %686 = vperm.xlu0 %685, %v446
    %v687 = vpop.permute.xlu0 %686
    %v690 = vlaneseq
    %v691 = vshrl.u32 %v690, 7
    %v692 = vsub.s32 0, %v691
    %v693 = vrot.slane %v673, %v692
    %v695 = vmul.f32 %v677, %v693
    %v696 = vmul.f32 %v682, %v693
    %v697 = vmul.f32 %v687, %v693
    %v698 = vadd.f32 %v660, %v695
    %v699 = vadd.f32 %v665, %v696
    %v700 = vadd.f32 %v670, %v697
    %v701 = vld [vmem:[%s11] sm:$0x1]
    %v703 = vlaneseq
    %v704 = vshrl.u32 %v703, 7
    %v705 = vsub.s32 0, %v704
    %v706 = vrot.slane %v701, %v705
    %v708 = vadd.f32 %v698, %v706
    %v709 = vadd.f32 %v699, %v706
    %v710 = vadd.f32 %v700, %v706
    %v711 = vsel %vm233, %v708, 0.0
    %712 = vadd.xlane.f32.xlu0 %v711
    %v713 = vpop.xlane.xlu0 %712
    %v714 = vsel %vm233, %v709, 0.0
    %715 = vadd.xlane.f32.xlu0 %v714
    %v716 = vpop.xlane.xlu0 %715
    %v717 = vsel %vm233, %v710, 0.0
    %718 = vadd.xlane.f32.xlu0 %v717
    %v719 = vpop.xlane.xlu0 %718
    %v720 = vmul.f32 %v708, %v708
    %v721 = vmul.f32 %v709, %v709
    %v722 = vmul.f32 %v710, %v710
    %v723 = vsel %vm233, %v720, 0.0
    %724 = vadd.xlane.f32.xlu0 %v723
    %v725 = vpop.xlane.xlu0 %724
    %v726 = vsel %vm233, %v721, 0.0
    %727 = vadd.xlane.f32.xlu0 %v726
    %v728 = vpop.xlane.xlu0 %727
    %v729 = vsel %vm233, %v722, 0.0
    %730 = vadd.xlane.f32.xlu0 %v729
    %v731 = vpop.xlane.xlu0 %730
    %v732 = vmul.f32 %v713, 0.015625
    %v733 = vmul.f32 %v716, 0.015625
    %v734 = vmul.f32 %v719, 0.015625
    %v735 = vmul.f32 %v725, 0.015625
    %v736 = vmul.f32 %v728, 0.015625
    %v737 = vmul.f32 %v731, 0.015625
    %v738 = vmul.f32 %v732, %v732
    %v739 = vmul.f32 %v733, %v733
    %v740 = vmul.f32 %v734, %v734
    %v741 = vsub.f32 %v735, %v738
    %v742 = vsub.f32 %v736, %v739
    %v743 = vsub.f32 %v737, %v740
    %v744 = vmax.f32 %v741, 0.0
    %v745 = vmax.f32 %v742, 0.0
    %v746 = vmax.f32 %v743, 0.0
    %v747 = vsub.f32 %v708, %v732
    %v748 = vsub.f32 %v709, %v733
    %v749 = vsub.f32 %v710, %v734
    %v750 = vadd.f32 %v744, 1e-05
    %v751 = vadd.f32 %v745, 1e-05
    %v752 = vadd.f32 %v746, 1e-05
    %v753 = vrsqrt.pop %v750
    %v754 = vrsqrt.pop %v751
    %v755 = vrsqrt.pop %v752
    %v756 = vmul.f32 %v747, %v753
    %v757 = vmul.f32 %v748, %v754
    %v758 = vmul.f32 %v749, %v755
    %v759 = vld [vmem:[#allocation5] sm:$0x1]
    %v761 = vlaneseq
    %v762 = vshrl.u32 %v761, 7
    %v763 = vsub.s32 0, %v762
    %v764 = vrot.slane %v759, %v763
    %v766 = vmul.f32 %v756, %v764
    %v767 = vmul.f32 %v757, %v764
    %v768 = vmul.f32 %v758, %v764
    %v769 = vld [vmem:[#allocation7] sm:$0x1]
    %v771 = vlaneseq
    %v772 = vshrl.u32 %v771, 7
    %v773 = vsub.s32 0, %v772
    %v774 = vrot.slane %v769, %v773
    %v776 = vadd.f32 %v766, %v774
    %v777 = vadd.f32 %v767, %v774
    %v778 = vadd.f32 %v768, %v774
    %v779 = vmax.f32 %v776, 0.0
    %v780 = vmax.f32 %v777, 0.0
    %v781 = vmax.f32 %v778, 0.0
    %v782 = vld [vmem:[%s14] sm:$0xff]
    %v783 = vld [vmem:[%s14 + $0x8] sm:$0xff]
    %v784 = vld [vmem:[%s14 + $0x10] sm:$0xff]
    %v785 = vld [vmem:[%s14 + $0x18] sm:$0xff]
    %v786 = vld [vmem:[%s14 + $0x20] sm:$0xff]
    %v787 = vld [vmem:[%s14 + $0x28] sm:$0xff]
    %v788 = vld [vmem:[%s14 + $0x30] sm:$0xff]
    %v789 = vld [vmem:[%s14 + $0x38] sm:$0xff]
    %v791 = vsel %vm233, %v779, 0
    %v794 = vsel %vm233, %v780, 0
    %v797 = vsel %vm233, %v781, 0
    %799 = vmatprep.subr.mxu0 0.0
    %800 = vmatpush1.msra.mxu0 %v782
    %801 = vmatprep.subr.mxu0 0.0
    %802 = vmatpush1.msra.mxu0 %v783
    %803 = vmatprep.subr.mxu0 0.0
    %804 = vmatpush1.msra.mxu0 %v784
    %805 = vmatprep.subr.mxu0 0.0
    %806 = vmatpush1.msra.mxu0 %v785
    %807 = vmatprep.subr.mxu0 0.0
    %808 = vmatpush1.msra.mxu0 %v786
    %809 = vmatprep.subr.mxu0 0.0
    %810 = vmatpush1.msra.mxu0 %v787
    %811 = vmatprep.subr.mxu0 0.0
    %812 = vmatpush1.msra.mxu0 %v788
    %813 = vmatprep.subr.mxu0 0.0
    %814 = vmatpush1.msra.mxu0 %v789
    %815 = vmatprep.subr.mxu0 0.0
    %816 = vmatpush1.msra.mxu0 0.0
    %817 = vmatprep.subr.mxu0 0.0
    %818 = vmatpush1.msra.mxu0 0.0
    %819 = vmatprep.subr.mxu0 0.0
    %820 = vmatpush1.msra.mxu0 0.0
    %821 = vmatprep.subr.mxu0 0.0
    %822 = vmatpush1.msra.mxu0 0.0
    %823 = vmatprep.subr.mxu0 0.0
    %824 = vmatpush1.msra.mxu0 0.0
    %825 = vmatprep.subr.mxu0 0.0
    %826 = vmatpush1.msra.mxu0 0.0
    %827 = vmatprep.subr.mxu0 0.0
    %828 = vmatpush1.msra.mxu0 0.0
    %829 = vmatprep.subr.mxu0 0.0
    %830 = vmatpush1.msra.mxu0 0.0
    %831 = vmatprep.subr.mxu0 0.0
    %832 = vmatpush1.msra.mxu0 0.0
    %833 = vmatprep.subr.mxu0 0.0
    %834 = vmatpush1.msra.mxu0 0.0
    %835 = vmatprep.subr.mxu0 0.0
    %836 = vmatpush1.msra.mxu0 0.0
    %837 = vmatprep.subr.mxu0 0.0
    %838 = vmatpush1.msra.mxu0 0.0
    %839 = vmatprep.subr.mxu0 0.0
    %840 = vmatpush1.msra.mxu0 0.0
    %841 = vmatprep.subr.mxu0 0.0
    %842 = vmatpush1.msra.mxu0 0.0
    %843 = vmatprep.subr.mxu0 0.0
    %844 = vmatpush1.msra.mxu0 0.0
    %845 = vmatprep.subr.mxu0 0.0
    %846 = vmatpush1.msra.mxu0 0.0
    %847 = vmatprep.subr.mxu0 0.0
    %848 = vmatpush1.msra.mxu0 0.0
    %849 = vmatprep.subr.mxu0 0.0
    %850 = vmatpush1.msra.mxu0 0.0
    %851 = vmatprep.subr.mxu0 0.0
    %852 = vmatpush1.msra.mxu0 0.0
    %853 = vmatprep.subr.mxu0 0.0
    %854 = vmatpush1.msra.mxu0 0.0
    %855 = vmatprep.subr.mxu0 0.0
    %856 = vmatpush1.msra.mxu0 0.0
    %857 = vmatprep.subr.mxu0 0.0
    %858 = vmatpush1.msra.mxu0 0.0
    %859 = vmatprep.subr.mxu0 0.0
    %860 = vmatpush1.msra.mxu0 0.0
    %861 = vmatprep.subr.mxu0 0.0
    %862 = vmatpush1.msra.mxu0 0.0
    %863 = vmatprep.mubr.f32.mxu0 0.0
    %864 = vmatmul.mubr.f32.gmra.mrb[0].mxu0 %v791
    %v865 = vpop.f32.mrb[0].mxu0
    %v866 = vadd.f32 0.0, %v865
    %v867 = vpop.f32.mrb[0].mxu0
    %868 = vmatprep.mubr.f32.mxu0 0.0
    %869 = vmatmul.mubr.f32.gmra.mrb[0].mxu0 %v794
    %v870 = vpop.f32.mrb[0].mxu0
    %v871 = vadd.f32 0.0, %v870
    %v872 = vpop.f32.mrb[0].mxu0
    %873 = vmatprep.mubr.f32.mxu0 0.0
    %874 = vmatmul.mubr.f32.gmra.mrb[0].mxu0 %v797
    %v875 = vpop.f32.mrb[0].mxu0
    %v876 = vadd.f32 0.0, %v875
    %v877 = vpop.f32.mrb[0].mxu0
    %878 = vdwg.mxu0
    %vm879 = vcmask 195584
    %v881 = vsel %vm879, %v432, 0
    %883 = vmatprep.subr.mxu0 0.0
    %884 = vmatpush1.msra.mxu0 %v866
    %885 = vmatprep.subr.mxu0 0.0
    %886 = vmatpush1.msra.mxu0 %v871
    %887 = vmatprep.subr.mxu0 0.0
    %888 = vmatpush1.msra.mxu0 %v876
    %889 = vmatprep.subr.mxu0 0.0
    %890 = vmatpush1.msra.mxu0 0.0
    %891 = vmatprep.subr.mxu0 0.0
    %892 = vmatpush1.msra.mxu0 0.0
    %893 = vmatprep.subr.mxu0 0.0
    %894 = vmatpush1.msra.mxu0 0.0
    %895 = vmatprep.subr.mxu0 0.0
    %896 = vmatpush1.msra.mxu0 0.0
    %897 = vmatprep.subr.mxu0 0.0
    %898 = vmatpush1.msra.mxu0 0.0
    %899 = vmatprep.subr.mxu0 0.0
    %900 = vmatpush1.msra.mxu0 0.0
    %901 = vmatprep.subr.mxu0 0.0
    %902 = vmatpush1.msra.mxu0 0.0
    %903 = vmatprep.subr.mxu0 0.0
    %904 = vmatpush1.msra.mxu0 0.0
    %905 = vmatprep.subr.mxu0 0.0
    %906 = vmatpush1.msra.mxu0 0.0
    %907 = vmatprep.subr.mxu0 0.0
    %908 = vmatpush1.msra.mxu0 0.0
    %909 = vmatprep.subr.mxu0 0.0
    %910 = vmatpush1.msra.mxu0 0.0
    %911 = vmatprep.subr.mxu0 0.0
    %912 = vmatpush1.msra.mxu0 0.0
    %913 = vmatprep.subr.mxu0 0.0
    %914 = vmatpush1.msra.mxu0 0.0
    %915 = vmatprep.subr.mxu0 0.0
    %916 = vmatpush1.msra.mxu0 0.0
    %917 = vmatprep.subr.mxu0 0.0
    %918 = vmatpush1.msra.mxu0 0.0
    %919 = vmatprep.subr.mxu0 0.0
    %920 = vmatpush1.msra.mxu0 0.0
    %921 = vmatprep.subr.mxu0 0.0
    %922 = vmatpush1.msra.mxu0 0.0
    %923 = vmatprep.subr.mxu0 0.0
    %924 = vmatpush1.msra.mxu0 0.0
    %925 = vmatprep.subr.mxu0 0.0
    %926 = vmatpush1.msra.mxu0 0.0
    %927 = vmatprep.subr.mxu0 0.0
    %928 = vmatpush1.msra.mxu0 0.0
    %929 = vmatprep.subr.mxu0 0.0
    %930 = vmatpush1.msra.mxu0 0.0
    %931 = vmatprep.subr.mxu0 0.0
    %932 = vmatpush1.msra.mxu0 0.0
    %933 = vmatprep.subr.mxu0 0.0
    %934 = vmatpush1.msra.mxu0 0.0
    %935 = vmatprep.subr.mxu0 0.0
    %936 = vmatpush1.msra.mxu0 0.0
    %937 = vmatprep.subr.mxu0 0.0
    %938 = vmatpush1.msra.mxu0 0.0
    %939 = vmatprep.subr.mxu0 0.0
    %940 = vmatpush1.msra.mxu0 0.0
    %941 = vmatprep.subr.mxu0 0.0
    %942 = vmatpush1.msra.mxu0 0.0
    %943 = vmatprep.subr.mxu0 0.0
    %944 = vmatpush1.msra.mxu0 0.0
    %945 = vmatprep.subr.mxu0 0.0
    %946 = vmatpush1.msra.mxu0 0.0
    %947 = vmatprep.mubr.f32.mxu0 0.0
    %948 = vmatmul.mubr.f32.gmra.mrb[0].mxu0 %v881
    %v949 = vpop.f32.mrb[0].mxu0
    %v950 = vadd.f32 0.0, %v949
    %v951 = vpop.f32.mrb[0].mxu0
    %952 = vdwg.mxu0
    %954 = vrot.lane.b32.xlu0 %v307, 64
    %v955 = vpop.permute.xlu0 %954
    %v957 = vsel %vm233, %v950, %v955
    %v958 = vld [vmem:[%s15] sm:$0xff]
    %v959 = vld [vmem:[%s15 + $0x8] sm:$0xff]
    %v960 = vld [vmem:[%s15 + $0x10] sm:$0xff]
    %v961 = vld [vmem:[%s15 + $0x18] sm:$0xff]
    %v962 = vld [vmem:[%s15 + $0x20] sm:$0xff]
    %v963 = vld [vmem:[%s15 + $0x28] sm:$0xff]
    %v964 = vld [vmem:[%s15 + $0x30] sm:$0xff]
    %v965 = vld [vmem:[%s15 + $0x38] sm:$0xff]
    %v966 = vld [vmem:[%s15 + $0x40] sm:$0xff]
    %v967 = vld [vmem:[%s15 + $0x48] sm:$0xff]
    %v968 = vld [vmem:[%s15 + $0x50] sm:$0xff]
    %v969 = vld [vmem:[%s15 + $0x58] sm:$0xff]
    %v970 = vld [vmem:[%s15 + $0x60] sm:$0xff]
    %v971 = vld [vmem:[%s15 + $0x68] sm:$0xff]
    %v972 = vld [vmem:[%s15 + $0x70] sm:$0xff]
    %v973 = vld [vmem:[%s15 + $0x78] sm:$0xff]
    %974 = vmatprep.subr.mxu0 0.0
    %975 = vmatpush1.msra.mxu0 %v958
    %976 = vmatprep.subr.mxu0 0.0
    %977 = vmatpush1.msra.mxu0 %v959
    %978 = vmatprep.subr.mxu0 0.0
    %979 = vmatpush1.msra.mxu0 %v960
    %980 = vmatprep.subr.mxu0 0.0
    %981 = vmatpush1.msra.mxu0 %v961
    %982 = vmatprep.subr.mxu0 0.0
    %983 = vmatpush1.msra.mxu0 %v962
    %984 = vmatprep.subr.mxu0 0.0
    %985 = vmatpush1.msra.mxu0 %v963
    %986 = vmatprep.subr.mxu0 0.0
    %987 = vmatpush1.msra.mxu0 %v964
    %988 = vmatprep.subr.mxu0 0.0
    %989 = vmatpush1.msra.mxu0 %v965
    %990 = vmatprep.subr.mxu0 0.0
    %991 = vmatpush1.msra.mxu0 %v966
    %992 = vmatprep.subr.mxu0 0.0
    %993 = vmatpush1.msra.mxu0 %v967
    %994 = vmatprep.subr.mxu0 0.0
    %995 = vmatpush1.msra.mxu0 %v968
    %996 = vmatprep.subr.mxu0 0.0
    %997 = vmatpush1.msra.mxu0 %v969
    %998 = vmatprep.subr.mxu0 0.0
    %999 = vmatpush1.msra.mxu0 %v970
    %1000 = vmatprep.subr.mxu0 0.0
    %1001 = vmatpush1.msra.mxu0 %v971
    %1002 = vmatprep.subr.mxu0 0.0
    %1003 = vmatpush1.msra.mxu0 %v972
    %1004 = vmatprep.subr.mxu0 0.0
    %1005 = vmatpush1.msra.mxu0 %v973
    %1006 = vmatprep.subr.mxu0 0.0
    %1007 = vmatpush1.msra.mxu0 0.0
    %1008 = vmatprep.subr.mxu0 0.0
    %1009 = vmatpush1.msra.mxu0 0.0
    %1010 = vmatprep.subr.mxu0 0.0
    %1011 = vmatpush1.msra.mxu0 0.0
    %1012 = vmatprep.subr.mxu0 0.0
    %1013 = vmatpush1.msra.mxu0 0.0
    %1014 = vmatprep.subr.mxu0 0.0
    %1015 = vmatpush1.msra.mxu0 0.0
    %1016 = vmatprep.subr.mxu0 0.0
    %1017 = vmatpush1.msra.mxu0 0.0
    %1018 = vmatprep.subr.mxu0 0.0
    %1019 = vmatpush1.msra.mxu0 0.0
    %1020 = vmatprep.subr.mxu0 0.0
    %1021 = vmatpush1.msra.mxu0 0.0
    %1022 = vmatprep.subr.mxu0 0.0
    %1023 = vmatpush1.msra.mxu0 0.0
    %1024 = vmatprep.subr.mxu0 0.0
    %1025 = vmatpush1.msra.mxu0 0.0
    %1026 = vmatprep.subr.mxu0 0.0
    %1027 = vmatpush1.msra.mxu0 0.0
    %1028 = vmatprep.subr.mxu0 0.0
    %1029 = vmatpush1.msra.mxu0 0.0
    %1030 = vmatprep.subr.mxu0 0.0
    %1031 = vmatpush1.msra.mxu0 0.0
    %1032 = vmatprep.subr.mxu0 0.0
    %1033 = vmatpush1.msra.mxu0 0.0
    %1034 = vmatprep.subr.mxu0 0.0
    %1035 = vmatpush1.msra.mxu0 0.0
    %1036 = vmatprep.subr.mxu0 0.0
    %1037 = vmatpush1.msra.mxu0 0.0
    %1038 = vmatprep.mubr.f32.mxu0 0.0
    %1039 = vmatmul.mubr.f32.gmra.mrb[0].mxu0 %v957
    %v1040 = vpop.f32.mrb[0].mxu0
    %v1041 = vadd.f32 0.0, %v1040
    %v1042 = vpop.f32.mrb[0].mxu0
    %1043 = vdwg.mxu0
    %v1044 = vmax.f32 %v1041, 0.0
    %v1045 = vld [vmem:[%s16] sm:$0xff]
    %v1046 = vld [vmem:[%s16 + $0x8] sm:$0xff]
    %v1047 = vld [vmem:[%s16 + $0x10] sm:$0xff]
    %v1048 = vld [vmem:[%s16 + $0x18] sm:$0xff]
    %v1049 = vld [vmem:[%s16 + $0x20] sm:$0xff]
    %v1050 = vld [vmem:[%s16 + $0x28] sm:$0xff]
    %v1051 = vld [vmem:[%s16 + $0x30] sm:$0xff]
    %v1052 = vld [vmem:[%s16 + $0x38] sm:$0xff]
    %v1054 = vsel %vm233, %v1044, 0
    %1056 = vmatprep.subr.mxu0 0.0
    %1057 = vmatpush1.msra.mxu0 %v1045
    %1058 = vmatprep.subr.mxu0 0.0
    %1059 = vmatpush1.msra.mxu0 %v1046
    %1060 = vmatprep.subr.mxu0 0.0
    %1061 = vmatpush1.msra.mxu0 %v1047
    %1062 = vmatprep.subr.mxu0 0.0
    %1063 = vmatpush1.msra.mxu0 %v1048
    %1064 = vmatprep.subr.mxu0 0.0
    %1065 = vmatpush1.msra.mxu0 %v1049
    %1066 = vmatprep.subr.mxu0 0.0
    %1067 = vmatpush1.msra.mxu0 %v1050
    %1068 = vmatprep.subr.mxu0 0.0
    %1069 = vmatpush1.msra.mxu0 %v1051
    %1070 = vmatprep.subr.mxu0 0.0
    %1071 = vmatpush1.msra.mxu0 %v1052
    %1072 = vmatprep.subr.mxu0 0.0
    %1073 = vmatpush1.msra.mxu0 0.0
    %1074 = vmatprep.subr.mxu0 0.0
    %1075 = vmatpush1.msra.mxu0 0.0
    %1076 = vmatprep.subr.mxu0 0.0
    %1077 = vmatpush1.msra.mxu0 0.0
    %1078 = vmatprep.subr.mxu0 0.0
    %1079 = vmatpush1.msra.mxu0 0.0
    %1080 = vmatprep.subr.mxu0 0.0
    %1081 = vmatpush1.msra.mxu0 0.0
    %1082 = vmatprep.subr.mxu0 0.0
    %1083 = vmatpush1.msra.mxu0 0.0
    %1084 = vmatprep.subr.mxu0 0.0
    %1085 = vmatpush1.msra.mxu0 0.0
    %1086 = vmatprep.subr.mxu0 0.0
    %1087 = vmatpush1.msra.mxu0 0.0
    %1088 = vmatprep.subr.mxu0 0.0
    %1089 = vmatpush1.msra.mxu0 0.0
    %1090 = vmatprep.subr.mxu0 0.0
    %1091 = vmatpush1.msra.mxu0 0.0
    %1092 = vmatprep.subr.mxu0 0.0
    %1093 = vmatpush1.msra.mxu0 0.0
    %1094 = vmatprep.subr.mxu0 0.0
    %1095 = vmatpush1.msra.mxu0 0.0
    %1096 = vmatprep.subr.mxu0 0.0
    %1097 = vmatpush1.msra.mxu0 0.0
    %1098 = vmatprep.subr.mxu0 0.0
    %1099 = vmatpush1.msra.mxu0 0.0
    %1100 = vmatprep.subr.mxu0 0.0
    %1101 = vmatpush1.msra.mxu0 0.0
    %1102 = vmatprep.subr.mxu0 0.0
    %1103 = vmatpush1.msra.mxu0 0.0
    %1104 = vmatprep.subr.mxu0 0.0
    %1105 = vmatpush1.msra.mxu0 0.0
    %1106 = vmatprep.subr.mxu0 0.0
    %1107 = vmatpush1.msra.mxu0 0.0
    %1108 = vmatprep.subr.mxu0 0.0
    %1109 = vmatpush1.msra.mxu0 0.0
    %1110 = vmatprep.subr.mxu0 0.0
    %1111 = vmatpush1.msra.mxu0 0.0
    %1112 = vmatprep.subr.mxu0 0.0
    %1113 = vmatpush1.msra.mxu0 0.0
    %1114 = vmatprep.subr.mxu0 0.0
    %1115 = vmatpush1.msra.mxu0 0.0
    %1116 = vmatprep.subr.mxu0 0.0
    %1117 = vmatpush1.msra.mxu0 0.0
    %1118 = vmatprep.subr.mxu0 0.0
    %1119 = vmatpush1.msra.mxu0 0.0
    %1120 = vmatprep.mubr.f32.mxu0 0.0
    %1121 = vmatmul.mubr.f32.gmra.mrb[0].mxu0 %v1054
    %v1122 = vpop.f32.mrb[0].mxu0
    %v1123 = vadd.f32 0.0, %v1122
    %v1124 = vpop.f32.mrb[0].mxu0
    %1125 = vdwg.mxu0
    %1126 = vxpose.xlu0.b32.start [1/16] %v432, 128
    %1127 = vxpose.xlu0.b32.cont [2/16] 0.0, 128
    %1128 = vxpose.xlu0.b32.cont [3/16] 0.0, 128
    %1129 = vxpose.xlu0.b32.cont [4/16] 0.0, 128
    %1130 = vxpose.xlu0.b32.cont [5/16] 0.0, 128
    %1131 = vxpose.xlu0.b32.cont [6/16] 0.0, 128
    %1132 = vxpose.xlu0.b32.cont [7/16] 0.0, 128
    %1133 = vxpose.xlu0.b32.cont [8/16] 0.0, 128
    %1134 = vxpose.xlu0.b32.cont [9/16] 0.0, 128
    %1135 = vxpose.xlu0.b32.cont [10/16] 0.0, 128
    %1136 = vxpose.xlu0.b32.cont [11/16] 0.0, 128
    %1137 = vxpose.xlu0.b32.cont [12/16] 0.0, 128
    %1138 = vxpose.xlu0.b32.cont [13/16] 0.0, 128
    %1139 = vxpose.xlu0.b32.cont [14/16] 0.0, 128
    %1140 = vxpose.xlu0.b32.cont [15/16] 0.0, 128
    %1141 = vxpose.xlu0.b32.end [16/16] 0.0, 128
    %v1142 = vpop.trf.xlu0
    %v1143 = vpop.trf.xlu0
    %v1144 = vpop.trf.xlu0
    %v1145 = vpop.trf.xlu0
    %v1146 = vpop.trf.xlu0
    %v1147 = vpop.trf.xlu0
    %v1148 = vpop.trf.xlu0
    %v1149 = vpop.trf.xlu0
    %v1150 = vpop.trf.xlu0
    %v1151 = vpop.trf.xlu0
    %v1152 = vpop.trf.xlu0
    %v1153 = vpop.trf.xlu0
    %v1154 = vpop.trf.xlu0
    %v1155 = vpop.trf.xlu0
    %v1156 = vpop.trf.xlu0
    %v1157 = vpop.trf.xlu0
    %vm1158 = vcmask 64512
    %v1160 = vsel %vm1158, %v1142, 0
    %v1163 = vsel %vm1158, %v1143, 0
    %v1166 = vsel %vm1158, %v1144, 0
    %1168 = vmatprep.subr.mxu0 0.0
    %1169 = vmatpush1.msra.mxu0 %v1123
    %1170 = vmatprep.subr.mxu0 0.0
    %1171 = vmatpush1.msra.mxu0 0.0
    %1172 = vmatprep.subr.mxu0 0.0
    %1173 = vmatpush1.msra.mxu0 0.0
    %1174 = vmatprep.subr.mxu0 0.0
    %1175 = vmatpush1.msra.mxu0 0.0
    %1176 = vmatprep.subr.mxu0 0.0
    %1177 = vmatpush1.msra.mxu0 0.0
    %1178 = vmatprep.subr.mxu0 0.0
    %1179 = vmatpush1.msra.mxu0 0.0
    %1180 = vmatprep.subr.mxu0 0.0
    %1181 = vmatpush1.msra.mxu0 0.0
    %1182 = vmatprep.subr.mxu0 0.0
    %1183 = vmatpush1.msra.mxu0 0.0
    %1184 = vmatprep.subr.mxu0 0.0
    %1185 = vmatpush1.msra.mxu0 0.0
    %1186 = vmatprep.subr.mxu0 0.0
    %1187 = vmatpush1.msra.mxu0 0.0
    %1188 = vmatprep.subr.mxu0 0.0
    %1189 = vmatpush1.msra.mxu0 0.0
    %1190 = vmatprep.subr.mxu0 0.0
    %1191 = vmatpush1.msra.mxu0 0.0
    %1192 = vmatprep.subr.mxu0 0.0
    %1193 = vmatpush1.msra.mxu0 0.0
    %1194 = vmatprep.subr.mxu0 0.0
    %1195 = vmatpush1.msra.mxu0 0.0
    %1196 = vmatprep.subr.mxu0 0.0
    %1197 = vmatpush1.msra.mxu0 0.0
    %1198 = vmatprep.subr.mxu0 0.0
    %1199 = vmatpush1.msra.mxu0 0.0
    %1200 = vmatprep.subr.mxu0 0.0
    %1201 = vmatpush1.msra.mxu0 0.0
    %1202 = vmatprep.subr.mxu0 0.0
    %1203 = vmatpush1.msra.mxu0 0.0
    %1204 = vmatprep.subr.mxu0 0.0
    %1205 = vmatpush1.msra.mxu0 0.0
    %1206 = vmatprep.subr.mxu0 0.0
    %1207 = vmatpush1.msra.mxu0 0.0
    %1208 = vmatprep.subr.mxu0 0.0
    %1209 = vmatpush1.msra.mxu0 0.0
    %1210 = vmatprep.subr.mxu0 0.0
    %1211 = vmatpush1.msra.mxu0 0.0
    %1212 = vmatprep.subr.mxu0 0.0
    %1213 = vmatpush1.msra.mxu0 0.0
    %1214 = vmatprep.subr.mxu0 0.0
    %1215 = vmatpush1.msra.mxu0 0.0
    %1216 = vmatprep.subr.mxu0 0.0
    %1217 = vmatpush1.msra.mxu0 0.0
    %1218 = vmatprep.subr.mxu0 0.0
    %1219 = vmatpush1.msra.mxu0 0.0
    %1220 = vmatprep.subr.mxu0 0.0
    %1221 = vmatpush1.msra.mxu0 0.0
    %1222 = vmatprep.subr.mxu0 0.0
    %1223 = vmatpush1.msra.mxu0 0.0
    %1224 = vmatprep.subr.mxu0 0.0
    %1225 = vmatpush1.msra.mxu0 0.0
    %1226 = vmatprep.subr.mxu0 0.0
    %1227 = vmatpush1.msra.mxu0 0.0
    %1228 = vmatprep.subr.mxu0 0.0
    %1229 = vmatpush1.msra.mxu0 0.0
    %1230 = vmatprep.subr.mxu0 0.0
    %1231 = vmatpush1.msra.mxu0 0.0
    %1232 = vmatprep.mubr.f32.mxu0 0.0
    %1233 = vmatmul.mubr.f32.gmra.mrb[0].mxu0 %v1160
    %v1234 = vpop.f32.mrb[0].mxu0
    %v1235 = vadd.f32 0.0, %v1234
    %v1236 = vpop.f32.mrb[0].mxu0
    %1237 = vmatprep.mubr.f32.mxu0 0.0
    %1238 = vmatmul.mubr.f32.gmra.mrb[0].mxu0 %v1163
    %v1239 = vpop.f32.mrb[0].mxu0
    %v1240 = vadd.f32 0.0, %v1239
    %v1241 = vpop.f32.mrb[0].mxu0
    %1242 = vmatprep.mubr.f32.mxu0 0.0
    %1243 = vmatmul.mubr.f32.gmra.mrb[0].mxu0 %v1166
    %v1244 = vpop.f32.mrb[0].mxu0
    %v1245 = vadd.f32 0.0, %v1244
    %v1246 = vpop.f32.mrb[0].mxu0
    %1247 = vdwg.mxu0
    %v1248 = vld [vmem:[%s17] sm:$0xff]
    %v1249 = vld [vmem:[%s17 + $0x8] sm:$0xff]
    %v1250 = vld [vmem:[%s17 + $0x10] sm:$0xff]
    %v1251 = vld [vmem:[%s17 + $0x18] sm:$0xff]
    %v1252 = vld [vmem:[%s17 + $0x20] sm:$0xff]
    %v1253 = vld [vmem:[%s17 + $0x28] sm:$0xff]
    %v1254 = vld [vmem:[%s17 + $0x30] sm:$0xff]
    %v1255 = vld [vmem:[%s17 + $0x38] sm:$0xff]
    %v1256 = vld [vmem:[#allocation8] sm:$0x1]
    %v1258 = vlaneseq
    %v1259 = vshrl.u32 %v1258, 7
    %v1260 = vsub.s32 0, %v1259
    %v1261 = vrot.slane %v1256, %v1260
    %v1264 = vsel %vm233, %v1235, 0
    %v1267 = vsel %vm233, %v1240, 0
    %v1270 = vsel %vm233, %v1245, 0
    %1272 = vmatprep.subr.mxu0 0.0
    %1273 = vmatpush1.msra.mxu0 %v1248
    %1274 = vmatprep.subr.mxu0 0.0
    %1275 = vmatpush1.msra.mxu0 %v1249
    %1276 = vmatprep.subr.mxu0 0.0
    %1277 = vmatpush1.msra.mxu0 %v1250
    %1278 = vmatprep.subr.mxu0 0.0
    %1279 = vmatpush1.msra.mxu0 %v1251
    %1280 = vmatprep.subr.mxu0 0.0
    %1281 = vmatpush1.msra.mxu0 %v1252
    %1282 = vmatprep.subr.mxu0 0.0
    %1283 = vmatpush1.msra.mxu0 %v1253
    %1284 = vmatprep.subr.mxu0 0.0
    %1285 = vmatpush1.msra.mxu0 %v1254
    %1286 = vmatprep.subr.mxu0 0.0
    %1287 = vmatpush1.msra.mxu0 %v1255
    %1288 = vmatprep.subr.mxu0 0.0
    %1289 = vmatpush1.msra.mxu0 0.0
    %1290 = vmatprep.subr.mxu0 0.0
    %1291 = vmatpush1.msra.mxu0 0.0
    %1292 = vmatprep.subr.mxu0 0.0
    %1293 = vmatpush1.msra.mxu0 0.0
    %1294 = vmatprep.subr.mxu0 0.0
    %1295 = vmatpush1.msra.mxu0 0.0
    %1296 = vmatprep.subr.mxu0 0.0
    %1297 = vmatpush1.msra.mxu0 0.0
    %1298 = vmatprep.subr.mxu0 0.0
    %1299 = vmatpush1.msra.mxu0 0.0
    %1300 = vmatprep.subr.mxu0 0.0
    %1301 = vmatpush1.msra.mxu0 0.0
    %1302 = vmatprep.subr.mxu0 0.0
    %1303 = vmatpush1.msra.mxu0 0.0
    %1304 = vmatprep.subr.mxu0 0.0
    %1305 = vmatpush1.msra.mxu0 0.0
    %1306 = vmatprep.subr.mxu0 0.0
    %1307 = vmatpush1.msra.mxu0 0.0
    %1308 = vmatprep.subr.mxu0 0.0
    %1309 = vmatpush1.msra.mxu0 0.0
    %1310 = vmatprep.subr.mxu0 0.0
    %1311 = vmatpush1.msra.mxu0 0.0
    %1312 = vmatprep.subr.mxu0 0.0
    %1313 = vmatpush1.msra.mxu0 0.0
    %1314 = vmatprep.subr.mxu0 0.0
    %1315 = vmatpush1.msra.mxu0 0.0
    %1316 = vmatprep.subr.mxu0 0.0
    %1317 = vmatpush1.msra.mxu0 0.0
    %1318 = vmatprep.subr.mxu0 0.0
    %1319 = vmatpush1.msra.mxu0 0.0
    %1320 = vmatprep.subr.mxu0 0.0
    %1321 = vmatpush1.msra.mxu0 0.0
    %1322 = vmatprep.subr.mxu0 0.0
    %1323 = vmatpush1.msra.mxu0 0.0
    %1324 = vmatprep.subr.mxu0 0.0
    %1325 = vmatpush1.msra.mxu0 0.0
    %1326 = vmatprep.subr.mxu0 0.0
    %1327 = vmatpush1.msra.mxu0 0.0
    %1328 = vmatprep.subr.mxu0 0.0
    %1329 = vmatpush1.msra.mxu0 0.0
    %1330 = vmatprep.subr.mxu0 0.0
    %1331 = vmatpush1.msra.mxu0 0.0
    %1332 = vmatprep.subr.mxu0 0.0
    %1333 = vmatpush1.msra.mxu0 0.0
    %1334 = vmatprep.subr.mxu0 0.0
    %1335 = vmatpush1.msra.mxu0 0.0
    %1336 = vmatprep.mubr.f32.mxu0 0.0
    %1337 = vmatmul.mubr.f32.gmra.mrb[0].mxu0 %v1264
    %v1338 = vpop.f32.mrb[0].mxu0
    %v1339 = vadd.f32 %v1261, %v1338
    %v1340 = vpop.f32.mrb[0].mxu0
    %1341 = vmatprep.mubr.f32.mxu0 0.0
    %1342 = vmatmul.mubr.f32.gmra.mrb[0].mxu0 %v1267
    %v1343 = vpop.f32.mrb[0].mxu0
    %v1344 = vadd.f32 %v1261, %v1343
    %v1345 = vpop.f32.mrb[0].mxu0
    %1346 = vmatprep.mubr.f32.mxu0 0.0
    %1347 = vmatmul.mubr.f32.gmra.mrb[0].mxu0 %v1270
    %v1348 = vpop.f32.mrb[0].mxu0
    %v1349 = vadd.f32 %v1261, %v1348
    %v1350 = vpop.f32.mrb[0].mxu0
    %1351 = vdwg.mxu0
    %v1352 = vld [vmem:[#allocation10] sm:$0x1]
    %v1354 = vlaneseq
    %v1355 = vshrl.u32 %v1354, 7
    %v1356 = vsub.s32 0, %v1355
    %v1357 = vrot.slane %v1352, %v1356
    %v1359 = vmul.f32 %v677, %v1357
    %v1360 = vmul.f32 %v682, %v1357
    %v1361 = vmul.f32 %v687, %v1357
    %v1362 = vadd.f32 %v1339, %v1359
    %v1363 = vadd.f32 %v1344, %v1360
    %v1364 = vadd.f32 %v1349, %v1361
    %v1365 = vld [vmem:[#allocation11] sm:$0x1]
    %v1367 = vlaneseq
    %v1368 = vshrl.u32 %v1367, 7
    %v1369 = vsub.s32 0, %v1368
    %v1370 = vrot.slane %v1365, %v1369
    %v1372 = vadd.f32 %v1362, %v1370
    %v1373 = vadd.f32 %v1363, %v1370
    %v1374 = vadd.f32 %v1364, %v1370
    %v1375 = vsel %vm233, %v1372, 0.0
    %1376 = vadd.xlane.f32.xlu0 %v1375
    %v1377 = vpop.xlane.xlu0 %1376
    %v1378 = vsel %vm233, %v1373, 0.0
    %1379 = vadd.xlane.f32.xlu0 %v1378
    %v1380 = vpop.xlane.xlu0 %1379
    %v1381 = vsel %vm233, %v1374, 0.0
    %1382 = vadd.xlane.f32.xlu0 %v1381
    %v1383 = vpop.xlane.xlu0 %1382
    %v1384 = vmul.f32 %v1372, %v1372
    %v1385 = vmul.f32 %v1373, %v1373
    %v1386 = vmul.f32 %v1374, %v1374
    %v1387 = vsel %vm233, %v1384, 0.0
    %1388 = vadd.xlane.f32.xlu0 %v1387
    %v1389 = vpop.xlane.xlu0 %1388
    %v1390 = vsel %vm233, %v1385, 0.0
    %1391 = vadd.xlane.f32.xlu0 %v1390
    %v1392 = vpop.xlane.xlu0 %1391
    %v1393 = vsel %vm233, %v1386, 0.0
    %1394 = vadd.xlane.f32.xlu0 %v1393
    %v1395 = vpop.xlane.xlu0 %1394
    %v1396 = vmul.f32 %v1377, 0.015625
    %v1397 = vmul.f32 %v1380, 0.015625
    %v1398 = vmul.f32 %v1383, 0.015625
    %v1399 = vmul.f32 %v1389, 0.015625
    %v1400 = vmul.f32 %v1392, 0.015625
    %v1401 = vmul.f32 %v1395, 0.015625
    %v1402 = vmul.f32 %v1396, %v1396
    %v1403 = vmul.f32 %v1397, %v1397
    %v1404 = vmul.f32 %v1398, %v1398
    %v1405 = vsub.f32 %v1399, %v1402
    %v1406 = vsub.f32 %v1400, %v1403
    %v1407 = vsub.f32 %v1401, %v1404
    %v1408 = vmax.f32 %v1405, 0.0
    %v1409 = vmax.f32 %v1406, 0.0
    %v1410 = vmax.f32 %v1407, 0.0
    %v1411 = vsub.f32 %v1372, %v1396
    %v1412 = vsub.f32 %v1373, %v1397
    %v1413 = vsub.f32 %v1374, %v1398
    %v1414 = vadd.f32 %v1408, 1e-05
    %v1415 = vadd.f32 %v1409, 1e-05
    %v1416 = vadd.f32 %v1410, 1e-05
    %v1417 = vrsqrt.pop %v1414
    %v1418 = vrsqrt.pop %v1415
    %v1419 = vrsqrt.pop %v1416
    %v1420 = vmul.f32 %v1411, %v1417
    %v1421 = vmul.f32 %v1412, %v1418
    %v1422 = vmul.f32 %v1413, %v1419
    %v1423 = vld [vmem:[#allocation13] sm:$0x1]
    %v1425 = vlaneseq
    %v1426 = vshrl.u32 %v1425, 7
    %v1427 = vsub.s32 0, %v1426
    %v1428 = vrot.slane %v1423, %v1427
    %v1430 = vmul.f32 %v1420, %v1428
    %v1431 = vmul.f32 %v1421, %v1428
    %v1432 = vmul.f32 %v1422, %v1428
    %v1433 = vld [vmem:[#allocation14] sm:$0x1]
    %v1435 = vlaneseq
    %v1436 = vshrl.u32 %v1435, 7
    %v1437 = vsub.s32 0, %v1436
    %v1438 = vrot.slane %v1433, %v1437
    %v1440 = vadd.f32 %v1430, %v1438
    %v1441 = vadd.f32 %v1431, %v1438
    %v1442 = vadd.f32 %v1432, %v1438
    %v1443 = vmax.f32 %v1440, 0.0
    %v1444 = vmax.f32 %v1441, 0.0
    %v1445 = vmax.f32 %v1442, 0.0
    %v1446 = vld [vmem:[%s23] sm:$0xff]
    %v1447 = vld [vmem:[%s23 + $0x8] sm:$0xff]
    %v1448 = vld [vmem:[%s23 + $0x10] sm:$0xff]
    %v1449 = vld [vmem:[%s23 + $0x18] sm:$0xff]
    %v1450 = vld [vmem:[%s23 + $0x20] sm:$0xff]
    %v1451 = vld [vmem:[%s23 + $0x28] sm:$0xff]
    %v1452 = vld [vmem:[%s23 + $0x30] sm:$0xff]
    %v1453 = vld [vmem:[%s23 + $0x38] sm:$0xff]
    %v1455 = vsel %vm233, %v1443, 0
    %v1458 = vsel %vm233, %v1444, 0
    %v1461 = vsel %vm233, %v1445, 0
    %1463 = vmatprep.subr.mxu0 0.0
    %1464 = vmatpush1.msra.mxu0 %v1446
    %1465 = vmatprep.subr.mxu0 0.0
    %1466 = vmatpush1.msra.mxu0 %v1447
    %1467 = vmatprep.subr.mxu0 0.0
    %1468 = vmatpush1.msra.mxu0 %v1448
    %1469 = vmatprep.subr.mxu0 0.0
    %1470 = vmatpush1.msra.mxu0 %v1449
    %1471 = vmatprep.subr.mxu0 0.0
    %1472 = vmatpush1.msra.mxu0 %v1450
    %1473 = vmatprep.subr.mxu0 0.0
    %1474 = vmatpush1.msra.mxu0 %v1451
    %1475 = vmatprep.subr.mxu0 0.0
    %1476 = vmatpush1.msra.mxu0 %v1452
    %1477 = vmatprep.subr.mxu0 0.0
    %1478 = vmatpush1.msra.mxu0 %v1453
    %1479 = vmatprep.subr.mxu0 0.0
    %1480 = vmatpush1.msra.mxu0 0.0
    %1481 = vmatprep.subr.mxu0 0.0
    %1482 = vmatpush1.msra.mxu0 0.0
    %1483 = vmatprep.subr.mxu0 0.0
    %1484 = vmatpush1.msra.mxu0 0.0
    %1485 = vmatprep.subr.mxu0 0.0
    %1486 = vmatpush1.msra.mxu0 0.0
    %1487 = vmatprep.subr.mxu0 0.0
    %1488 = vmatpush1.msra.mxu0 0.0
    %1489 = vmatprep.subr.mxu0 0.0
    %1490 = vmatpush1.msra.mxu0 0.0
    %1491 = vmatprep.subr.mxu0 0.0
    %1492 = vmatpush1.msra.mxu0 0.0
    %1493 = vmatprep.subr.mxu0 0.0
    %1494 = vmatpush1.msra.mxu0 0.0
    %1495 = vmatprep.subr.mxu0 0.0
    %1496 = vmatpush1.msra.mxu0 0.0
    %1497 = vmatprep.subr.mxu0 0.0
    %1498 = vmatpush1.msra.mxu0 0.0
    %1499 = vmatprep.subr.mxu0 0.0
    %1500 = vmatpush1.msra.mxu0 0.0
    %1501 = vmatprep.subr.mxu0 0.0
    %1502 = vmatpush1.msra.mxu0 0.0
    %1503 = vmatprep.subr.mxu0 0.0
    %1504 = vmatpush1.msra.mxu0 0.0
    %1505 = vmatprep.subr.mxu0 0.0
    %1506 = vmatpush1.msra.mxu0 0.0
    %1507 = vmatprep.subr.mxu0 0.0
    %1508 = vmatpush1.msra.mxu0 0.0
    %1509 = vmatprep.subr.mxu0 0.0
    %1510 = vmatpush1.msra.mxu0 0.0
    %1511 = vmatprep.subr.mxu0 0.0
    %1512 = vmatpush1.msra.mxu0 0.0
    %1513 = vmatprep.subr.mxu0 0.0
    %1514 = vmatpush1.msra.mxu0 0.0
    %1515 = vmatprep.subr.mxu0 0.0
    %1516 = vmatpush1.msra.mxu0 0.0
    %1517 = vmatprep.subr.mxu0 0.0
    %1518 = vmatpush1.msra.mxu0 0.0
    %1519 = vmatprep.subr.mxu0 0.0
    %1520 = vmatpush1.msra.mxu0 0.0
    %1521 = vmatprep.subr.mxu0 0.0
    %1522 = vmatpush1.msra.mxu0 0.0
    %1523 = vmatprep.subr.mxu0 0.0
    %1524 = vmatpush1.msra.mxu0 0.0
    %1525 = vmatprep.subr.mxu0 0.0
    %1526 = vmatpush1.msra.mxu0 0.0
    %1527 = vmatprep.mubr.f32.mxu0 0.0
    %1528 = vmatmul.mubr.f32.gmra.mrb[0].mxu0 %v1455
    %v1529 = vpop.f32.mrb[0].mxu0
    %v1530 = vadd.f32 0.0, %v1529
    %v1531 = vpop.f32.mrb[0].mxu0
    %1532 = vmatprep.mubr.f32.mxu0 0.0
    %1533 = vmatmul.mubr.f32.gmra.mrb[0].mxu0 %v1458
    %v1534 = vpop.f32.mrb[0].mxu0
    %v1535 = vadd.f32 0.0, %v1534
    %v1536 = vpop.f32.mrb[0].mxu0
    %1537 = vmatprep.mubr.f32.mxu0 0.0
    %1538 = vmatmul.mubr.f32.gmra.mrb[0].mxu0 %v1461
    %v1539 = vpop.f32.mrb[0].mxu0
    %v1540 = vadd.f32 0.0, %v1539
    %v1541 = vpop.f32.mrb[0].mxu0
    %1542 = vdwg.mxu0
    %v1544 = vsel %vm879, %v442, 0
    %v1547 = vsel %vm879, %v443, 0
    %1549 = vmatprep.subr.mxu0 0.0
    %1550 = vmatpush1.msra.mxu0 %v1530
    %1551 = vmatprep.subr.mxu0 0.0
    %1552 = vmatpush1.msra.mxu0 %v1535
    %1553 = vmatprep.subr.mxu0 0.0
    %1554 = vmatpush1.msra.mxu0 %v1540
    %1555 = vmatprep.subr.mxu0 0.0
    %1556 = vmatpush1.msra.mxu0 0.0
    %1557 = vmatprep.subr.mxu0 0.0
    %1558 = vmatpush1.msra.mxu0 0.0
    %1559 = vmatprep.subr.mxu0 0.0
    %1560 = vmatpush1.msra.mxu0 0.0
    %1561 = vmatprep.subr.mxu0 0.0
    %1562 = vmatpush1.msra.mxu0 0.0
    %1563 = vmatprep.subr.mxu0 0.0
    %1564 = vmatpush1.msra.mxu0 0.0
    %1565 = vmatprep.subr.mxu0 0.0
    %1566 = vmatpush1.msra.mxu0 0.0
    %1567 = vmatprep.subr.mxu0 0.0
    %1568 = vmatpush1.msra.mxu0 0.0
    %1569 = vmatprep.subr.mxu0 0.0
    %1570 = vmatpush1.msra.mxu0 0.0
    %1571 = vmatprep.subr.mxu0 0.0
    %1572 = vmatpush1.msra.mxu0 0.0
    %1573 = vmatprep.subr.mxu0 0.0
    %1574 = vmatpush1.msra.mxu0 0.0
    %1575 = vmatprep.subr.mxu0 0.0
    %1576 = vmatpush1.msra.mxu0 0.0
    %1577 = vmatprep.subr.mxu0 0.0
    %1578 = vmatpush1.msra.mxu0 0.0
    %1579 = vmatprep.subr.mxu0 0.0
    %1580 = vmatpush1.msra.mxu0 0.0
    %1581 = vmatprep.subr.mxu0 0.0
    %1582 = vmatpush1.msra.mxu0 0.0
    %1583 = vmatprep.subr.mxu0 0.0
    %1584 = vmatpush1.msra.mxu0 0.0
    %1585 = vmatprep.subr.mxu0 0.0
    %1586 = vmatpush1.msra.mxu0 0.0
    %1587 = vmatprep.subr.mxu0 0.0
    %1588 = vmatpush1.msra.mxu0 0.0
    %1589 = vmatprep.subr.mxu0 0.0
    %1590 = vmatpush1.msra.mxu0 0.0
    %1591 = vmatprep.subr.mxu0 0.0
    %1592 = vmatpush1.msra.mxu0 0.0
    %1593 = vmatprep.subr.mxu0 0.0
    %1594 = vmatpush1.msra.mxu0 0.0
    %1595 = vmatprep.subr.mxu0 0.0
    %1596 = vmatpush1.msra.mxu0 0.0
    %1597 = vmatprep.subr.mxu0 0.0
    %1598 = vmatpush1.msra.mxu0 0.0
    %1599 = vmatprep.subr.mxu0 0.0
    %1600 = vmatpush1.msra.mxu0 0.0
    %1601 = vmatprep.subr.mxu0 0.0
    %1602 = vmatpush1.msra.mxu0 0.0
    %1603 = vmatprep.subr.mxu0 0.0
    %1604 = vmatpush1.msra.mxu0 0.0
    %1605 = vmatprep.subr.mxu0 0.0
    %1606 = vmatpush1.msra.mxu0 0.0
    %1607 = vmatprep.subr.mxu0 0.0
    %1608 = vmatpush1.msra.mxu0 0.0
    %1609 = vmatprep.subr.mxu0 0.0
    %1610 = vmatpush1.msra.mxu0 0.0
    %1611 = vmatprep.subr.mxu0 0.0
    %1612 = vmatpush1.msra.mxu0 0.0
    %1613 = vmatprep.mubr.f32.mxu0 0.0
    %1614 = vmatmul.mubr.f32.gmra.mrb[0].mxu0 %v1544
    %v1615 = vpop.f32.mrb[0].mxu0
    %v1616 = vadd.f32 0.0, %v1615
    %v1617 = vpop.f32.mrb[0].mxu0
    %1618 = vmatprep.mubr.f32.mxu0 0.0
    %1619 = vmatmul.mubr.f32.gmra.mrb[0].mxu0 %v1547
    %v1620 = vpop.f32.mrb[0].mxu0
    %v1621 = vadd.f32 0.0, %v1620
    %v1622 = vpop.f32.mrb[0].mxu0
    %1623 = vdwg.mxu0
    %1626 = vrot.lane.b32.xlu0 %v420, 64
    %v1627 = vpop.permute.xlu0 %1626
    %1628 = vrot.lane.b32.xlu0 %v421, 64
    %v1629 = vpop.permute.xlu0 %1628
    %v1632 = vsel %vm233, %v1616, %v1627
    %v1633 = vsel %vm233, %v1621, %v1629
    %v1634 = vld [vmem:[%s24] sm:$0xff]
    %v1635 = vld [vmem:[%s24 + $0x8] sm:$0xff]
    %v1636 = vld [vmem:[%s24 + $0x10] sm:$0xff]
    %v1637 = vld [vmem:[%s24 + $0x18] sm:$0xff]
    %v1638 = vld [vmem:[%s24 + $0x20] sm:$0xff]
    %v1639 = vld [vmem:[%s24 + $0x28] sm:$0xff]
    %v1640 = vld [vmem:[%s24 + $0x30] sm:$0xff]
    %v1641 = vld [vmem:[%s24 + $0x38] sm:$0xff]
    %v1642 = vld [vmem:[%s24 + $0x40] sm:$0xff]
    %v1643 = vld [vmem:[%s24 + $0x48] sm:$0xff]
    %v1644 = vld [vmem:[%s24 + $0x50] sm:$0xff]
    %v1645 = vld [vmem:[%s24 + $0x58] sm:$0xff]
    %v1646 = vld [vmem:[%s24 + $0x60] sm:$0xff]
    %v1647 = vld [vmem:[%s24 + $0x68] sm:$0xff]
    %v1648 = vld [vmem:[%s24 + $0x70] sm:$0xff]
    %v1649 = vld [vmem:[%s24 + $0x78] sm:$0xff]
    %1650 = vmatprep.subr.mxu0 0.0
    %1651 = vmatpush1.msra.mxu0 %v1634
    %1652 = vmatprep.subr.mxu0 0.0
    %1653 = vmatpush1.msra.mxu0 %v1635
    %1654 = vmatprep.subr.mxu0 0.0
    %1655 = vmatpush1.msra.mxu0 %v1636
    %1656 = vmatprep.subr.mxu0 0.0
    %1657 = vmatpush1.msra.mxu0 %v1637
    %1658 = vmatprep.subr.mxu0 0.0
    %1659 = vmatpush1.msra.mxu0 %v1638
    %1660 = vmatprep.subr.mxu0 0.0
    %1661 = vmatpush1.msra.mxu0 %v1639
    %1662 = vmatprep.subr.mxu0 0.0
    %1663 = vmatpush1.msra.mxu0 %v1640
    %1664 = vmatprep.subr.mxu0 0.0
    %1665 = vmatpush1.msra.mxu0 %v1641
    %1666 = vmatprep.subr.mxu0 0.0
    %1667 = vmatpush1.msra.mxu0 %v1642
    %1668 = vmatprep.subr.mxu0 0.0
    %1669 = vmatpush1.msra.mxu0 %v1643
    %1670 = vmatprep.subr.mxu0 0.0
    %1671 = vmatpush1.msra.mxu0 %v1644
    %1672 = vmatprep.subr.mxu0 0.0
    %1673 = vmatpush1.msra.mxu0 %v1645
    %1674 = vmatprep.subr.mxu0 0.0
    %1675 = vmatpush1.msra.mxu0 %v1646
    %1676 = vmatprep.subr.mxu0 0.0
    %1677 = vmatpush1.msra.mxu0 %v1647
    %1678 = vmatprep.subr.mxu0 0.0
    %1679 = vmatpush1.msra.mxu0 %v1648
    %1680 = vmatprep.subr.mxu0 0.0
    %1681 = vmatpush1.msra.mxu0 %v1649
    %1682 = vmatprep.subr.mxu0 0.0
    %1683 = vmatpush1.msra.mxu0 0.0
    %1684 = vmatprep.subr.mxu0 0.0
    %1685 = vmatpush1.msra.mxu0 0.0
    %1686 = vmatprep.subr.mxu0 0.0
    %1687 = vmatpush1.msra.mxu0 0.0
    %1688 = vmatprep.subr.mxu0 0.0
    %1689 = vmatpush1.msra.mxu0 0.0
    %1690 = vmatprep.subr.mxu0 0.0
    %1691 = vmatpush1.msra.mxu0 0.0
    %1692 = vmatprep.subr.mxu0 0.0
    %1693 = vmatpush1.msra.mxu0 0.0
    %1694 = vmatprep.subr.mxu0 0.0
    %1695 = vmatpush1.msra.mxu0 0.0
    %1696 = vmatprep.subr.mxu0 0.0
    %1697 = vmatpush1.msra.mxu0 0.0
    %1698 = vmatprep.subr.mxu0 0.0
    %1699 = vmatpush1.msra.mxu0 0.0
    %1700 = vmatprep.subr.mxu0 0.0
    %1701 = vmatpush1.msra.mxu0 0.0
    %1702 = vmatprep.subr.mxu0 0.0
    %1703 = vmatpush1.msra.mxu0 0.0
    %1704 = vmatprep.subr.mxu0 0.0
    %1705 = vmatpush1.msra.mxu0 0.0
    %1706 = vmatprep.subr.mxu0 0.0
    %1707 = vmatpush1.msra.mxu0 0.0
    %1708 = vmatprep.subr.mxu0 0.0
    %1709 = vmatpush1.msra.mxu0 0.0
    %1710 = vmatprep.subr.mxu0 0.0
    %1711 = vmatpush1.msra.mxu0 0.0
    %1712 = vmatprep.subr.mxu0 0.0
    %1713 = vmatpush1.msra.mxu0 0.0
    %1714 = vmatprep.mubr.f32.mxu0 0.0
    %1715 = vmatmul.mubr.f32.gmra.mrb[0].mxu0 %v1632
    %v1716 = vpop.f32.mrb[0].mxu0
    %v1717 = vadd.f32 0.0, %v1716
    %v1718 = vpop.f32.mrb[0].mxu0
    %1719 = vmatprep.mubr.f32.mxu0 0.0
    %1720 = vmatmul.mubr.f32.gmra.mrb[0].mxu0 %v1633
    %v1721 = vpop.f32.mrb[0].mxu0
    %v1722 = vadd.f32 0.0, %v1721
    %v1723 = vpop.f32.mrb[0].mxu0
    %1724 = vdwg.mxu0
    %v1725 = vmax.f32 %v1717, 0.0
    %v1726 = vmax.f32 %v1722, 0.0
    %v1727 = vld [vmem:[#allocation16] sm:$0xff]
    %v1728 = vld [vmem:[#allocation16 + $0x8] sm:$0xff]
    %v1729 = vld [vmem:[#allocation16 + $0x10] sm:$0xff]
    %v1730 = vld [vmem:[#allocation16 + $0x18] sm:$0xff]
    %v1731 = vld [vmem:[#allocation16 + $0x20] sm:$0xff]
    %v1732 = vld [vmem:[#allocation16 + $0x28] sm:$0xff]
    %v1733 = vld [vmem:[#allocation16 + $0x30] sm:$0xff]
    %v1734 = vld [vmem:[#allocation16 + $0x38] sm:$0xff]
    %v1736 = vsel %vm233, %v1725, 0
    %v1739 = vsel %vm233, %v1726, 0
    %1741 = vmatprep.subr.mxu0 0.0
    %1742 = vmatpush1.msra.mxu0 %v1727
    %1743 = vmatprep.subr.mxu0 0.0
    %1744 = vmatpush1.msra.mxu0 %v1728
    %1745 = vmatprep.subr.mxu0 0.0
    %1746 = vmatpush1.msra.mxu0 %v1729
    %1747 = vmatprep.subr.mxu0 0.0
    %1748 = vmatpush1.msra.mxu0 %v1730
    %1749 = vmatprep.subr.mxu0 0.0
    %1750 = vmatpush1.msra.mxu0 %v1731
    %1751 = vmatprep.subr.mxu0 0.0
    %1752 = vmatpush1.msra.mxu0 %v1732
    %1753 = vmatprep.subr.mxu0 0.0
    %1754 = vmatpush1.msra.mxu0 %v1733
    %1755 = vmatprep.subr.mxu0 0.0
    %1756 = vmatpush1.msra.mxu0 %v1734
    %1757 = vmatprep.subr.mxu0 0.0
    %1758 = vmatpush1.msra.mxu0 0.0
    %1759 = vmatprep.subr.mxu0 0.0
    %1760 = vmatpush1.msra.mxu0 0.0
    %1761 = vmatprep.subr.mxu0 0.0
    %1762 = vmatpush1.msra.mxu0 0.0
    %1763 = vmatprep.subr.mxu0 0.0
    %1764 = vmatpush1.msra.mxu0 0.0
    %1765 = vmatprep.subr.mxu0 0.0
    %1766 = vmatpush1.msra.mxu0 0.0
    %1767 = vmatprep.subr.mxu0 0.0
    %1768 = vmatpush1.msra.mxu0 0.0
    %1769 = vmatprep.subr.mxu0 0.0
    %1770 = vmatpush1.msra.mxu0 0.0
    %1771 = vmatprep.subr.mxu0 0.0
    %1772 = vmatpush1.msra.mxu0 0.0
    %1773 = vmatprep.subr.mxu0 0.0
    %1774 = vmatpush1.msra.mxu0 0.0
    %1775 = vmatprep.subr.mxu0 0.0
    %1776 = vmatpush1.msra.mxu0 0.0
    %1777 = vmatprep.subr.mxu0 0.0
    %1778 = vmatpush1.msra.mxu0 0.0
    %1779 = vmatprep.subr.mxu0 0.0
    %1780 = vmatpush1.msra.mxu0 0.0
    %1781 = vmatprep.subr.mxu0 0.0
    %1782 = vmatpush1.msra.mxu0 0.0
    %1783 = vmatprep.subr.mxu0 0.0
    %1784 = vmatpush1.msra.mxu0 0.0
    %1785 = vmatprep.subr.mxu0 0.0
    %1786 = vmatpush1.msra.mxu0 0.0
    %1787 = vmatprep.subr.mxu0 0.0
    %1788 = vmatpush1.msra.mxu0 0.0
    %1789 = vmatprep.subr.mxu0 0.0
    %1790 = vmatpush1.msra.mxu0 0.0
    %1791 = vmatprep.subr.mxu0 0.0
    %1792 = vmatpush1.msra.mxu0 0.0
    %1793 = vmatprep.subr.mxu0 0.0
    %1794 = vmatpush1.msra.mxu0 0.0
    %1795 = vmatprep.subr.mxu0 0.0
    %1796 = vmatpush1.msra.mxu0 0.0
    %1797 = vmatprep.subr.mxu0 0.0
    %1798 = vmatpush1.msra.mxu0 0.0
    %1799 = vmatprep.subr.mxu0 0.0
    %1800 = vmatpush1.msra.mxu0 0.0
    %1801 = vmatprep.subr.mxu0 0.0
    %1802 = vmatpush1.msra.mxu0 0.0
    %1803 = vmatprep.subr.mxu0 0.0
    %1804 = vmatpush1.msra.mxu0 0.0
    %1805 = vmatprep.mubr.f32.mxu0 0.0
    %1806 = vmatmul.mubr.f32.gmra.mrb[0].mxu0 %v1736
    %v1807 = vpop.f32.mrb[0].mxu0
    %v1808 = vadd.f32 0.0, %v1807
    %v1809 = vpop.f32.mrb[0].mxu0
    %1810 = vmatprep.mubr.f32.mxu0 0.0
    %1811 = vmatmul.mubr.f32.gmra.mrb[0].mxu0 %v1739
    %v1812 = vpop.f32.mrb[0].mxu0
    %v1813 = vadd.f32 0.0, %v1812
    %v1814 = vpop.f32.mrb[0].mxu0
    %1815 = vdwg.mxu0
    %v1816 = vld [vmem:[#allocation17] sm:$0xff]
    %v1817 = vld [vmem:[#allocation17 + $0x8] sm:$0xff]
    %v1818 = vld [vmem:[#allocation17 + $0x10] sm:$0xff]
    %v1819 = vld [vmem:[#allocation17 + $0x18] sm:$0xff]
    %v1820 = vld [vmem:[#allocation17 + $0x20] sm:$0xff]
    %v1821 = vld [vmem:[#allocation17 + $0x28] sm:$0xff]
    %v1822 = vld [vmem:[#allocation17 + $0x30] sm:$0xff]
    %v1823 = vld [vmem:[#allocation17 + $0x38] sm:$0xff]
    %v1825 = vsel %vm233, %v1808, 0
    %v1828 = vsel %vm233, %v1813, 0
    %1830 = vmatprep.subr.mxu0 0.0
    %1831 = vmatpush1.msra.mxu0 %v1816
    %1832 = vmatprep.subr.mxu0 0.0
    %1833 = vmatpush1.msra.mxu0 %v1817
    %1834 = vmatprep.subr.mxu0 0.0
    %1835 = vmatpush1.msra.mxu0 %v1818
    %1836 = vmatprep.subr.mxu0 0.0
    %1837 = vmatpush1.msra.mxu0 %v1819
    %1838 = vmatprep.subr.mxu0 0.0
    %1839 = vmatpush1.msra.mxu0 %v1820
    %1840 = vmatprep.subr.mxu0 0.0
    %1841 = vmatpush1.msra.mxu0 %v1821
    %1842 = vmatprep.subr.mxu0 0.0
    %1843 = vmatpush1.msra.mxu0 %v1822
    %1844 = vmatprep.subr.mxu0 0.0
    %1845 = vmatpush1.msra.mxu0 %v1823
    %1846 = vmatprep.subr.mxu0 0.0
    %1847 = vmatpush1.msra.mxu0 0.0
    %1848 = vmatprep.subr.mxu0 0.0
    %1849 = vmatpush1.msra.mxu0 0.0
    %1850 = vmatprep.subr.mxu0 0.0
    %1851 = vmatpush1.msra.mxu0 0.0
    %1852 = vmatprep.subr.mxu0 0.0
    %1853 = vmatpush1.msra.mxu0 0.0
    %1854 = vmatprep.subr.mxu0 0.0
    %1855 = vmatpush1.msra.mxu0 0.0
    %1856 = vmatprep.subr.mxu0 0.0
    %1857 = vmatpush1.msra.mxu0 0.0
    %1858 = vmatprep.subr.mxu0 0.0
    %1859 = vmatpush1.msra.mxu0 0.0
    %1860 = vmatprep.subr.mxu0 0.0
    %1861 = vmatpush1.msra.mxu0 0.0
    %1862 = vmatprep.subr.mxu0 0.0
    %1863 = vmatpush1.msra.mxu0 0.0
    %1864 = vmatprep.subr.mxu0 0.0
    %1865 = vmatpush1.msra.mxu0 0.0
    %1866 = vmatprep.subr.mxu0 0.0
    %1867 = vmatpush1.msra.mxu0 0.0
    %1868 = vmatprep.subr.mxu0 0.0
    %1869 = vmatpush1.msra.mxu0 0.0
    %1870 = vmatprep.subr.mxu0 0.0
    %1871 = vmatpush1.msra.mxu0 0.0
    %1872 = vmatprep.subr.mxu0 0.0
    %1873 = vmatpush1.msra.mxu0 0.0
    %1874 = vmatprep.subr.mxu0 0.0
    %1875 = vmatpush1.msra.mxu0 0.0
    %1876 = vmatprep.subr.mxu0 0.0
    %1877 = vmatpush1.msra.mxu0 0.0
    %1878 = vmatprep.subr.mxu0 0.0
    %1879 = vmatpush1.msra.mxu0 0.0
    %1880 = vmatprep.subr.mxu0 0.0
    %1881 = vmatpush1.msra.mxu0 0.0
    %1882 = vmatprep.subr.mxu0 0.0
    %1883 = vmatpush1.msra.mxu0 0.0
    %1884 = vmatprep.subr.mxu0 0.0
    %1885 = vmatpush1.msra.mxu0 0.0
    %1886 = vmatprep.subr.mxu0 0.0
    %1887 = vmatpush1.msra.mxu0 0.0
    %1888 = vmatprep.subr.mxu0 0.0
    %1889 = vmatpush1.msra.mxu0 0.0
    %1890 = vmatprep.subr.mxu0 0.0
    %1891 = vmatpush1.msra.mxu0 0.0
    %1892 = vmatprep.subr.mxu0 0.0
    %1893 = vmatpush1.msra.mxu0 0.0
    %1894 = vmatprep.mubr.f32.mxu0 0.0
    %1895 = vmatmul.mubr.f32.gmra.mrb[0].mxu0 %v1825
    %v1896 = vpop.f32.mrb[0].mxu0
    %v1897 = vadd.f32 0.0, %v1896
    %v1898 = vpop.f32.mrb[0].mxu0
    %1899 = vmatprep.mubr.f32.mxu0 0.0
    %1900 = vmatmul.mubr.f32.gmra.mrb[0].mxu0 %v1828
    %v1901 = vpop.f32.mrb[0].mxu0
    %v1902 = vadd.f32 0.0, %v1901
    %v1903 = vpop.f32.mrb[0].mxu0
    %1904 = vdwg.mxu0
    %v1905 = vmax.f32 %v1897, 0.0
    %v1906 = vmax.f32 %v1902, 0.0
    %v1907 = vsel %vm233, %v1905, 0.0
    %v1908 = vsel %vm233, %v1906, 0.0
    %v1909 = vadd.f32 %v1907, %v1908
    %v1910 = vrot.slane %v1909, 4
    %v1911 = vadd.f32 %v1909, %v1910
    %v1912 = vrot.slane %v1911, 2
    %v1913 = vadd.f32 %v1911, %v1912
    %v1914 = vrot.slane %v1913, 1
    %v1915 = vadd.f32 %v1913, %v1914
    %v1916 = vmul.f32 %v1915, 0.0625
    %v1917 = vld [vmem:[%s27] sm:$0xff]
    %v1918 = vld [vmem:[%s27 + $0x8] sm:$0xff]
    %v1919 = vld [vmem:[%s27 + $0x10] sm:$0xff]
    %v1920 = vld [vmem:[%s27 + $0x18] sm:$0xff]
    %v1921 = vld [vmem:[%s27 + $0x20] sm:$0xff]
    %v1922 = vld [vmem:[%s27 + $0x28] sm:$0xff]
    %v1923 = vld [vmem:[%s27 + $0x30] sm:$0xff]
    %v1924 = vld [vmem:[%s27 + $0x38] sm:$0xff]
    %v1926 = vsel %vm233, %v1916, 0
    %1928 = vmatprep.subr.mxu0 0.0
    %1929 = vmatpush1.msra.mxu0 %v1917
    %1930 = vmatprep.subr.mxu0 0.0
    %1931 = vmatpush1.msra.mxu0 %v1918
    %1932 = vmatprep.subr.mxu0 0.0
    %1933 = vmatpush1.msra.mxu0 %v1919
    %1934 = vmatprep.subr.mxu0 0.0
    %1935 = vmatpush1.msra.mxu0 %v1920
    %1936 = vmatprep.subr.mxu0 0.0
    %1937 = vmatpush1.msra.mxu0 %v1921
    %1938 = vmatprep.subr.mxu0 0.0
    %1939 = vmatpush1.msra.mxu0 %v1922
    %1940 = vmatprep.subr.mxu0 0.0
    %1941 = vmatpush1.msra.mxu0 %v1923
    %1942 = vmatprep.subr.mxu0 0.0
    %1943 = vmatpush1.msra.mxu0 %v1924
    %1944 = vmatprep.subr.mxu0 0.0
    %1945 = vmatpush1.msra.mxu0 0.0
    %1946 = vmatprep.subr.mxu0 0.0
    %1947 = vmatpush1.msra.mxu0 0.0
    %1948 = vmatprep.subr.mxu0 0.0
    %1949 = vmatpush1.msra.mxu0 0.0
    %1950 = vmatprep.subr.mxu0 0.0
    %1951 = vmatpush1.msra.mxu0 0.0
    %1952 = vmatprep.subr.mxu0 0.0
    %1953 = vmatpush1.msra.mxu0 0.0
    %1954 = vmatprep.subr.mxu0 0.0
    %1955 = vmatpush1.msra.mxu0 0.0
    %1956 = vmatprep.subr.mxu0 0.0
    %1957 = vmatpush1.msra.mxu0 0.0
    %1958 = vmatprep.subr.mxu0 0.0
    %1959 = vmatpush1.msra.mxu0 0.0
    %1960 = vmatprep.subr.mxu0 0.0
    %1961 = vmatpush1.msra.mxu0 0.0
    %1962 = vmatprep.subr.mxu0 0.0
    %1963 = vmatpush1.msra.mxu0 0.0
    %1964 = vmatprep.subr.mxu0 0.0
    %1965 = vmatpush1.msra.mxu0 0.0
    %1966 = vmatprep.subr.mxu0 0.0
    %1967 = vmatpush1.msra.mxu0 0.0
    %1968 = vmatprep.subr.mxu0 0.0
    %1969 = vmatpush1.msra.mxu0 0.0
    %1970 = vmatprep.subr.mxu0 0.0
    %1971 = vmatpush1.msra.mxu0 0.0
    %1972 = vmatprep.subr.mxu0 0.0
    %1973 = vmatpush1.msra.mxu0 0.0
    %1974 = vmatprep.subr.mxu0 0.0
    %1975 = vmatpush1.msra.mxu0 0.0
    %1976 = vmatprep.subr.mxu0 0.0
    %1977 = vmatpush1.msra.mxu0 0.0
    %1978 = vmatprep.subr.mxu0 0.0
    %1979 = vmatpush1.msra.mxu0 0.0
    %1980 = vmatprep.subr.mxu0 0.0
    %1981 = vmatpush1.msra.mxu0 0.0
    %1982 = vmatprep.subr.mxu0 0.0
    %1983 = vmatpush1.msra.mxu0 0.0
    %1984 = vmatprep.subr.mxu0 0.0
    %1985 = vmatpush1.msra.mxu0 0.0
    %1986 = vmatprep.subr.mxu0 0.0
    %1987 = vmatpush1.msra.mxu0 0.0
    %1988 = vmatprep.subr.mxu0 0.0
    %1989 = vmatpush1.msra.mxu0 0.0
    %1990 = vmatprep.subr.mxu0 0.0
    %1991 = vmatpush1.msra.mxu0 0.0
    %1992 = vmatprep.mubr.f32.mxu0 0.0
    %1993 = vmatmul.mubr.f32.gmra.mrb[0].mxu0 %v1926
    %v1994 = vpop.f32.mrb[0].mxu0
    %v1995 = vadd.f32 0.0, %v1994
    %v1996 = vpop.f32.mrb[0].mxu0
    %1997 = vdwg.mxu0
    %v1998 = vxor.u32 %v1995, 2147483648
    %v1999 = vmul.f32 %v1998, 1.442695
    %v2000 = vpow.pop %v1999
    %v2001 = vadd.f32 %v2000, 1.0
    %v2002 = vrcp.pop %v2001
    %v2003 = vmul.f32 1.0, %v2002
    %vm2004 = vcmask 0
    %2005 = vst.msk [vmem:[#allocation19] sm:$0x1] %vm2004, %v2003
    // Predicated region
    $region154: #{tpu_custom_call.1} parent=1 // pred_check
      _
    $region155: #{tpu_custom_call.1} parent=1 // pred_check_branch
      %2007 = sbr.rel (0) target = $region157
    $region156: #{tpu_custom_call.1} parent=1 // pred_region
      %s2009 = ssub.s32 16, 16
      %2010 = vsyncadd [#allocation4], %s2009
      %s2012 = sshll.u32 [#allocation19], 4
      %s2013 = int_to_ptr.vmem [resolvable:$true] %s2012
      %2015 = dma.vmem_to_hbm [thread:$0]  %s2013, 16, %s28, [#allocation4]
    $region157: #{tpu_custom_call.1} parent=1 // pred_fallthru
      _
    // Predicated region
    $region158: #{tpu_custom_call.1} parent=1 // pred_check
      _
    $region159: #{tpu_custom_call.1} parent=1 // pred_check_branch
      %2017 = sbr.rel (0) target = $region161
    $region160: #{tpu_custom_call.1} parent=1 // pred_region
      %2018 = dma.done [#allocation4], 16
    $region161: #{tpu_custom_call.1} parent=1 // pred_fallthru
      _
    %2019 = vsyncpa [#allocation3], 1
    %2020 = vsyncpa [#allocation6], 1
    %2021 = vsyncpa [#allocation9], 1
    %2022 = vsyncpa [#allocation12], 1
    %2023 = vsyncpa [#allocation15], 1
    %2024 = vsyncpa [#allocation18], 1
    %2025 = vsyncpa [#allocation4], 1

</llo_original>
